<compile_context>
chip_gen: v7x
topology: tpu7x:2x2x1
jax: 0.10.0
libtpu: 0.0.40
codegen_flags: <defaults>
</compile_context>

<pallas_src>
import functools

import numpy as np

import jax
import jax.numpy as jnp
from jax.experimental import pallas as pl
from jax.experimental.pallas import tpu as pltpu


# ---------------------------------------------------------------------------
# Constant spatial operators (built with numpy at trace time -> XLA constants)
# ---------------------------------------------------------------------------
def _pool2x2_matrix_1d(n):
    m = np.zeros((n, n // 2), np.float32)
    m[np.arange(n), np.arange(n) // 2] = 0.5
    return m


def _bilinear_up2_matrix_1d(n_in):
    # nn.Upsample(scale_factor=2, mode="bilinear", align_corners=False)
    n_out = 2 * n_in
    src = (np.arange(n_out, dtype=np.float64) + 0.5) * (n_in / n_out) - 0.5
    src = np.maximum(src, 0.0)
    i0 = np.minimum(np.floor(src).astype(np.int64), n_in - 1)
    i1 = np.minimum(i0 + 1, n_in - 1)
    frac = (src - i0).astype(np.float32)
    m = np.zeros((n_in, n_out), np.float32)
    cols = np.arange(n_out)
    m[i0, cols] += 1.0 - frac
    m[i1, cols] += frac
    return m


def _spatial_operators(h, w):
    """Right-multiplication operators on (C, H*W) row-major feature maps."""
    pool_top = np.kron(_pool2x2_matrix_1d(h), _pool2x2_matrix_1d(w))       # (HW,   HW/4)
    pool_mid = np.kron(_pool2x2_matrix_1d(h // 2),
                       _pool2x2_matrix_1d(w // 2))                         # (HW/4, HW/16)
    up_btn = np.kron(_bilinear_up2_matrix_1d(h // 4),
                     _bilinear_up2_matrix_1d(w // 4))                      # (HW/16, HW/4)
    up_mid = np.kron(_bilinear_up2_matrix_1d(h // 2),
                     _bilinear_up2_matrix_1d(w // 2))                      # (HW/4,  HW)
    return (jnp.asarray(pool_top), jnp.asarray(pool_mid),
            jnp.asarray(up_btn), jnp.asarray(up_mid))


def _im2col3x3(x_padded):
    """x_padded: (N, C, H+2, W+2) -> (N, C*9, H*W).
    Column order (ci, dy, dx) matches torch_weight.reshape(Cout, Cin*9)."""
    n, c, hp, wp = x_padded.shape
    h, w = hp - 2, wp - 2
    taps = [x_padded[:, :, dy:dy + h, dx:dx + w]
            for dy in range(3) for dx in range(3)]
    patches = jnp.stack(taps, axis=2)                  # (N, C, 9, H, W)
    return patches.reshape(n, c * 9, h * w)


# ---------------------------------------------------------------------------
# Pallas kernels
# ---------------------------------------------------------------------------
def _skff2(x_up, x_skip, du_w, fc_cat, c):
    """SKFF (height=2) on (C, P) feature maps.
    du_w: (d, C) conv_du weight; fc_cat: (2C, d) = [fc0; fc1]."""
    feats_u = x_up + x_skip
    gap = jnp.mean(feats_u, axis=1, keepdims=True)                     # (C, 1)
    z = jnp.dot(du_w, gap, preferred_element_type=jnp.float32)         # (d, 1)
    # TODO(synk): CCLNet's SKFF conv_du activation (PReLU vs LeakyReLU slope)
    # is not in the provided spec; LeakyReLU(0.2) kept from the prior version.
    z = jnp.where(z >= 0.0, z, 0.2 * z)
    a = jnp.dot(fc_cat, z, preferred_element_type=jnp.float32)         # (2C, 1)
    a0, a1 = a[:c, :], a[c:, :]
    m = jnp.maximum(a0, a1)
    e0 = jnp.exp(a0 - m)
    e1 = jnp.exp(a1 - m)
    inv = 1.0 / (e0 + e1)
    return x_up * (e0 * inv) + x_skip * (e1 * inv)


def _hr_trunk_kernel(patches_ref, c1w_ref, c1b_ref, down_cat_ref, down4b_ref,
                     up24_ref, up12_ref, mid_du_ref, mid_fc_ref,
                     top_du_ref, top_fc_ref,
                     pool_top_ref, pool_mid_ref, up_btn_ref, up_mid_ref,
                     fus_top_ref):
    """One image per grid step; everything in (channels, pixels) layout."""
    dot = functools.partial(jnp.dot, preferred_element_type=jnp.float32)
    f = c1w_ref.shape[0]                   # n_feat
    c1 = down_cat_ref.shape[0] // 2        # 2 * n_feat

    # conv(3x3, pad=1) + ReLU  ->  fea_top: (F, HW)
    fea_top = jnp.maximum(dot(c1w_ref[...], patches_ref[...]) + c1b_ref[...],
                          0.0)

    # Shared 2x2 avg pool of fea_top, then the two 1x1 "Down" convs (batched
    # into a single matmul since they consume the same pooled input).
    pool1 = dot(fea_top, pool_top_ref[...])                  # (F,  HW/4)
    down_both = dot(down_cat_ref[...], pool1)                # (4F, HW/4)
    fea_mid = down_both[:c1, :]                              # down2    (2F, HW/4)
    mid_tmp = down_both[c1:, :]                              # down4[0] (2F, HW/4)

    # down4[1]: 2x2 avg pool + 1x1 conv -> fea_btn (4F, HW/16)
    fea_btn = dot(down4b_ref[...], dot(mid_tmp, pool_mid_ref[...]))

    # up24_2: 1x1 conv then bilinear x2 (constant stencil matrix) -> (2F, HW/4)
    up_m = dot(dot(up24_ref[...], fea_btn), up_btn_ref[...])

    # SKFF over [up24_2(fea_btn), fea_mid]
    fus_mid = _skff2(up_m, fea_mid, mid_du_ref[...], mid_fc_ref[...], c1)

    # up12_1: 1x1 conv then bilinear x2 -> (F, HW)
    up_t = dot(dot(up12_ref[...], fus_mid), up_mid_ref[...])

    # SKFF over [up12_1(fus_mid), fea_top]  ->  hr_feature (F, HW)
    fus_top_ref[...] = _skff2(up_t, fea_top, top_du_ref[...], top_fc_ref[...], f)


def _final_conv_kernel(patches_ref, w_ref, b_ref, o_ref):
    """ReflectionPad2d(1) + Conv2d(F, out_chn, 3) + Tanh (patches pre-extracted)."""
    acc = jnp.dot(w_ref[...], patches_ref[...],
                  preferred_element_type=jnp.float32) + b_ref[...]
    o_ref[...] = jnp.tanh(acc)


# ---------------------------------------------------------------------------
# Parameters (deterministic synthetic init, PyTorch weight layouts)
# ---------------------------------------------------------------------------
def init_params(key, input_chn=3, n_feat=8, output_chn=3, chan_factor=2,
                reduction=8):
    ks = list(jax.random.split(key, 16))

    def conv3_w(k, cout, cin):
        return jax.random.normal(k, (cout, cin, 3, 3), jnp.float32) / np.sqrt(9 * cin)

    def conv1_w(k, cout, cin):
        return jax.random.normal(k, (cout, cin), jnp.float32) / np.sqrt(cin)

    c1 = int(n_feat * chan_factor)
    c2 = int(n_feat * chan_factor ** 2)
    d_mid = max(c1 // reduction, 4)
    d_top = max(n_feat // reduction, 4)

    return {
        # nn.Conv2d(input_chn, n_feat, 3, padding=1) + ReLU
        "conv_w": conv3_w(ks[0], n_feat, input_chn),
        "conv_b": 0.01 * jax.random.normal(ks[1], (n_feat,), jnp.float32),
        # DownSample = AvgPool2d(2) + Conv2d(1x1, no bias)
        "down2_w": conv1_w(ks[2], c1, n_feat),
        "down4a_w": conv1_w(ks[3], c1, n_feat),
        "down4b_w": conv1_w(ks[4], c2, c1),
        # UpSample = Conv2d(1x1, no bias) + bilinear x2
        "up24_w": conv1_w(ks[5], c1, c2),
        "up12_w": conv1_w(ks[6], n_feat, c1),
        # SKFF (height=2), no biases
        "skff_mid": {"du_w": conv1_w(ks[7], d_mid, c1),
                     "fc0_w": conv1_w(ks[8], c1, d_mid),
                     "fc1_w": conv1_w(ks[9], c1, d_mid)},
        "skff_top": {"du_w": conv1_w(ks[10], d_top, n_feat),
                     "fc0_w": conv1_w(ks[11], n_feat, d_top),
                     "fc1_w": conv1_w(ks[12], n_feat, d_top)},
        # ReflectionPad2d(1) + Conv2d(n_feat, output_chn, 3) + Tanh
        "nl_w": conv3_w(ks[13], output_chn, n_feat),
        "nl_b": 0.01 * jax.random.normal(ks[14], (output_chn,), jnp.float32),
    }


# ---------------------------------------------------------------------------
# HRBranch forward
# ---------------------------------------------------------------------------
def hr_branch_forward(x_nchw, params):
    """Returns (hr_feature, out), both NCHW, matching the PyTorch module."""
    n, cin, h, w = x_nchw.shape
    assert h % 4 == 0 and w % 4 == 0, "H and W must be multiples of 4"
    # TODO(synk): AvgPool2d(ceil_mode=True, count_include_pad=False) padding
    # path for odd spatial sizes is not implemented.
    p = h * w
    f = params["conv_w"].shape[0]                 # n_feat
    cout = params["nl_w"].shape[0]                # output_chn
    x = x_nchw.astype(jnp.float32)

    pool_top, pool_mid, up_btn, up_mid = _spatial_operators(h, w)

    # ---- pack weights into kernel-ready (Cout, Cin[*9]) matrices -----------
    c1w = params["conv_w"].reshape(f, cin * 9)
    c1b = params["conv_b"].reshape(f, 1)
    down_cat = jnp.concatenate([params["down2_w"], params["down4a_w"]], axis=0)
    mid_fc = jnp.concatenate([params["skff_mid"]["fc0_w"],
                              params["skff_mid"]["fc1_w"]], axis=0)
    top_fc = jnp.concatenate([params["skff_top"]["fc0_w"],
                              params["skff_top"]["fc1_w"]], axis=0)
    nl_w = params["nl_w"].reshape(cout, f * 9)
    nl_b = params["nl_b"].reshape(cout, 1)

    # ---- im2col of the (tiny) input with zero padding -----------------------
    xp = jnp.pad(x, ((0, 0), (0, 0), (1, 1), (1, 1)))
    patches1 = _im2col3x3(xp)                                # (N, Cin*9, HW)

    def img_spec(rows):
        return pl.BlockSpec((None, rows, p), lambda i: (i, 0, 0))

    def full2d(arr):
        return pl.BlockSpec(arr.shape, lambda i: (0, 0))

    cparams = pltpu.CompilerParams(dimension_semantics=("parallel",))

    # ---- kernel 1: whole trunk, one image per grid step ---------------------
    fus_top = pl.pallas_call(
        _hr_trunk_kernel,
        out_shape=jax.ShapeDtypeStruct((n, f, p), jnp.float32),
        grid=(n,),
        in_specs=[
            img_spec(cin * 9),
            full2d(c1w), full2d(c1b),
            full2d(down_cat), full2d(params["down4b_w"]),
            full2d(params["up24_w"]), full2d(params["up12_w"]),
            full2d(params["skff_mid"]["du_w"]), full2d(mid_fc),
            full2d(params["skff_top"]["du_w"]), full2d(top_fc),
            full2d(pool_top), full2d(pool_mid), full2d(up_btn), full2d(up_mid),
        ],
        out_specs=pl.BlockSpec((None, f, p), lambda i: (i, 0, 0)),
        compiler_params=cparams,
    )(patches1, c1w, c1b, down_cat, params["down4b_w"],
      params["up24_w"], params["up12_w"],
      params["skff_mid"]["du_w"], mid_fc,
      params["skff_top"]["du_w"], top_fc,
      pool_top, pool_mid, up_btn, up_mid)

    hr_feature = fus_top.reshape(n, f, h, w)                 # already NCHW

    # ---- kernel 2: ReflectionPad2d(1) + 3x3 conv + Tanh ---------------------
    hp = jnp.pad(hr_feature, ((0, 0), (0, 0), (1, 1), (1, 1)), mode="reflect")
    patches2 = _im2col3x3(hp)                                # (N, F*9, HW)

    out = pl.pallas_call(
        _final_conv_kernel,
        out_shape=jax.ShapeDtypeStruct((n, cout, p), jnp.float32),
        grid=(n,),
        in_specs=[img_spec(f * 9), full2d(nl_w), full2d(nl_b)],
        out_specs=pl.BlockSpec((None, cout, p), lambda i: (i, 0, 0)),
        compiler_params=cparams,
    )(patches2, nl_w, nl_b)

    return hr_feature, out.reshape(n, cout, h, w)


# ---------------------------------------------------------------------------
if __name__ == "__main__":
    INPUT_CHN, N_FEAT, OUTPUT_CHN = 3, 8, 3
    N, H, W = 2, 16, 16

    x = jax.random.normal(jax.random.PRNGKey(0), (N, INPUT_CHN, H, W),
                          jnp.float32)
    params = init_params(jax.random.PRNGKey(42), input_chn=INPUT_CHN,
                         n_feat=N_FEAT, output_chn=OUTPUT_CHN)

    fwd = jax.jit(hr_branch_forward)
    hr_feature, out = fwd(x, params)
    jax.block_until_ready((hr_feature, out))

    assert hr_feature.shape == (N, N_FEAT, H, W)
    assert out.shape == (N, OUTPUT_CHN, H, W)
    assert bool(jnp.all(jnp.isfinite(hr_feature)))
    assert bool(jnp.all(jnp.isfinite(out)))
    print("KERNEL_OK")
</pallas_src>

<mosaic_0001>
module attributes {stable_mosaic.version = 11 : i64} {
  func.func @_hr_trunk_kernel(%arg0: i32, %arg1: memref<1x27x256xf32, #tpu.memory_space<vmem>>, %arg2: memref<8x27xf32, #tpu.memory_space<vmem>>, %arg3: memref<8x1xf32, #tpu.memory_space<vmem>>, %arg4: memref<32x8xf32, #tpu.memory_space<vmem>>, %arg5: memref<32x16xf32, #tpu.memory_space<vmem>>, %arg6: memref<16x32xf32, #tpu.memory_space<vmem>>, %arg7: memref<8x16xf32, #tpu.memory_space<vmem>>, %arg8: memref<4x16xf32, #tpu.memory_space<vmem>>, %arg9: memref<32x4xf32, #tpu.memory_space<vmem>>, %arg10: memref<4x8xf32, #tpu.memory_space<vmem>>, %arg11: memref<16x4xf32, #tpu.memory_space<vmem>>, %arg12: memref<256x64xf32, #tpu.memory_space<vmem>>, %arg13: memref<64x16xf32, #tpu.memory_space<vmem>>, %arg14: memref<16x64xf32, #tpu.memory_space<vmem>>, %arg15: memref<64x256xf32, #tpu.memory_space<vmem>>, %arg16: memref<1x8x256xf32, #tpu.memory_space<vmem>>) attributes {dimension_semantics = [#tpu.dimension_semantics<parallel>], iteration_bounds = array<i64: 2>, scalar_prefetch = 0 : i64, scratch_operands = 0 : i64, tpu.core_type = #tpu.core_type<tc>, window_params = [{transform_indices = @transform_0, window_bounds = array<i64: 1, 27, 256>}, {pipeline_mode = #tpu.pipeline_mode<synchronous>, transform_indices = @transform_1, window_bounds = array<i64: 8, 27>}, {pipeline_mode = #tpu.pipeline_mode<synchronous>, transform_indices = @transform_2, window_bounds = array<i64: 8, 1>}, {pipeline_mode = #tpu.pipeline_mode<synchronous>, transform_indices = @transform_3, window_bounds = array<i64: 32, 8>}, {pipeline_mode = #tpu.pipeline_mode<synchronous>, transform_indices = @transform_4, window_bounds = array<i64: 32, 16>}, {pipeline_mode = #tpu.pipeline_mode<synchronous>, transform_indices = @transform_5, window_bounds = array<i64: 16, 32>}, {pipeline_mode = #tpu.pipeline_mode<synchronous>, transform_indices = @transform_6, window_bounds = array<i64: 8, 16>}, {pipeline_mode = #tpu.pipeline_mode<synchronous>, transform_indices = @transform_7, window_bounds = array<i64: 4, 16>}, {pipeline_mode = #tpu.pipeline_mode<synchronous>, transform_indices = @transform_8, window_bounds = array<i64: 32, 4>}, {pipeline_mode = #tpu.pipeline_mode<synchronous>, transform_indices = @transform_9, window_bounds = array<i64: 4, 8>}, {pipeline_mode = #tpu.pipeline_mode<synchronous>, transform_indices = @transform_10, window_bounds = array<i64: 16, 4>}, {pipeline_mode = #tpu.pipeline_mode<synchronous>, transform_indices = @transform_11, window_bounds = array<i64: 256, 64>}, {pipeline_mode = #tpu.pipeline_mode<synchronous>, transform_indices = @transform_12, window_bounds = array<i64: 64, 16>}, {pipeline_mode = #tpu.pipeline_mode<synchronous>, transform_indices = @transform_13, window_bounds = array<i64: 16, 64>}, {pipeline_mode = #tpu.pipeline_mode<synchronous>, transform_indices = @transform_14, window_bounds = array<i64: 64, 256>}, {transform_indices = @transform_15, window_bounds = array<i64: 1, 8, 256>}]} {
    %c0 = arith.constant 0 : index
    %c0_0 = arith.constant 0 : index
    %0 = vector.load %arg2[%c0, %c0_0] : memref<8x27xf32, #tpu.memory_space<vmem>>, vector<8x27xf32>
    %c0_1 = arith.constant 0 : index
    %c0_2 = arith.constant 0 : index
    %c0_3 = arith.constant 0 : index
    %1 = vector.load %arg1[%c0_1, %c0_2, %c0_3] : memref<1x27x256xf32, #tpu.memory_space<vmem>>, vector<1x27x256xf32>
    %2 = vector.shape_cast %1 : vector<1x27x256xf32> to vector<27x256xf32>
    %cst = arith.constant dense<0.000000e+00> : vector<8x256xf32>
    %3 = tpu.matmul %0, %2, %cst {dimension_numbers = #tpu.dot_dimension_numbers<[1], [0], [0], [1], [0, 0, 1, 1], [], []>} : vector<8x27xf32>, vector<27x256xf32>, vector<8x256xf32> -> vector<8x256xf32>
    %c0_4 = arith.constant 0 : index
    %c0_5 = arith.constant 0 : index
    %4 = vector.load %arg3[%c0_4, %c0_5] : memref<8x1xf32, #tpu.memory_space<vmem>>, vector<8x1xf32>
    %5 = vector.broadcast %4 : vector<8x1xf32> to vector<8x256xf32>
    %6 = arith.addf %3, %5 : vector<8x256xf32>
    %cst_6 = arith.constant 0.000000e+00 : f32
    %7 = vector.broadcast %cst_6 : f32 to vector<8x256xf32>
    %8 = arith.maximumf %6, %7 : vector<8x256xf32>
    %c0_7 = arith.constant 0 : index
    %c0_8 = arith.constant 0 : index
    %9 = vector.load %arg12[%c0_7, %c0_8] : memref<256x64xf32, #tpu.memory_space<vmem>>, vector<256x64xf32>
    %cst_9 = arith.constant dense<0.000000e+00> : vector<8x64xf32>
    %10 = tpu.matmul %8, %9, %cst_9 {dimension_numbers = #tpu.dot_dimension_numbers<[1], [0], [0], [1], [0, 0, 1, 1], [], []>} : vector<8x256xf32>, vector<256x64xf32>, vector<8x64xf32> -> vector<8x64xf32>
    %c0_10 = arith.constant 0 : index
    %c0_11 = arith.constant 0 : index
    %11 = vector.load %arg4[%c0_10, %c0_11] : memref<32x8xf32, #tpu.memory_space<vmem>>, vector<32x8xf32>
    %cst_12 = arith.constant dense<0.000000e+00> : vector<32x64xf32>
    %12 = tpu.matmul %11, %10, %cst_12 {dimension_numbers = #tpu.dot_dimension_numbers<[1], [0], [0], [1], [0, 0, 1, 1], [], []>} : vector<32x8xf32>, vector<8x64xf32>, vector<32x64xf32> -> vector<32x64xf32>
    %13 = vector.extract_strided_slice %12 {offsets = [0, 0], sizes = [16, 64], strides = [1, 1]} : vector<32x64xf32> to vector<16x64xf32>
    %14 = vector.extract_strided_slice %12 {offsets = [16, 0], sizes = [16, 64], strides = [1, 1]} : vector<32x64xf32> to vector<16x64xf32>
    %c0_13 = arith.constant 0 : index
    %c0_14 = arith.constant 0 : index
    %15 = vector.load %arg5[%c0_13, %c0_14] : memref<32x16xf32, #tpu.memory_space<vmem>>, vector<32x16xf32>
    %c0_15 = arith.constant 0 : index
    %c0_16 = arith.constant 0 : index
    %16 = vector.load %arg13[%c0_15, %c0_16] : memref<64x16xf32, #tpu.memory_space<vmem>>, vector<64x16xf32>
    %cst_17 = arith.constant dense<0.000000e+00> : vector<16x16xf32>
    %17 = tpu.matmul %14, %16, %cst_17 {dimension_numbers = #tpu.dot_dimension_numbers<[1], [0], [0], [1], [0, 0, 1, 1], [], []>} : vector<16x64xf32>, vector<64x16xf32>, vector<16x16xf32> -> vector<16x16xf32>
    %cst_18 = arith.constant dense<0.000000e+00> : vector<32x16xf32>
    %18 = tpu.matmul %15, %17, %cst_18 {dimension_numbers = #tpu.dot_dimension_numbers<[1], [0], [0], [1], [0, 0, 1, 1], [], []>} : vector<32x16xf32>, vector<16x16xf32>, vector<32x16xf32> -> vector<32x16xf32>
    %c0_19 = arith.constant 0 : index
    %c0_20 = arith.constant 0 : index
    %19 = vector.load %arg6[%c0_19, %c0_20] : memref<16x32xf32, #tpu.memory_space<vmem>>, vector<16x32xf32>
    %cst_21 = arith.constant dense<0.000000e+00> : vector<16x16xf32>
    %20 = tpu.matmul %19, %18, %cst_21 {dimension_numbers = #tpu.dot_dimension_numbers<[1], [0], [0], [1], [0, 0, 1, 1], [], []>} : vector<16x32xf32>, vector<32x16xf32>, vector<16x16xf32> -> vector<16x16xf32>
    %c0_22 = arith.constant 0 : index
    %c0_23 = arith.constant 0 : index
    %21 = vector.load %arg14[%c0_22, %c0_23] : memref<16x64xf32, #tpu.memory_space<vmem>>, vector<16x64xf32>
    %cst_24 = arith.constant dense<0.000000e+00> : vector<16x64xf32>
    %22 = tpu.matmul %20, %21, %cst_24 {dimension_numbers = #tpu.dot_dimension_numbers<[1], [0], [0], [1], [0, 0, 1, 1], [], []>} : vector<16x16xf32>, vector<16x64xf32>, vector<16x64xf32> -> vector<16x64xf32>
    %c0_25 = arith.constant 0 : index
    %c0_26 = arith.constant 0 : index
    %23 = vector.load %arg8[%c0_25, %c0_26] : memref<4x16xf32, #tpu.memory_space<vmem>>, vector<4x16xf32>
    %c0_27 = arith.constant 0 : index
    %c0_28 = arith.constant 0 : index
    %24 = vector.load %arg9[%c0_27, %c0_28] : memref<32x4xf32, #tpu.memory_space<vmem>>, vector<32x4xf32>
    %25 = arith.addf %22, %13 : vector<16x64xf32>
    %cst_29 = arith.constant dense<0.000000e+00> : vector<16xf32>
    %26 = vector.multi_reduction <add>, %25, %cst_29 [1] : vector<16x64xf32> to vector<16xf32>
    %27 = vector.shape_cast %26 : vector<16xf32> to vector<16x1xf32>
    %cst_30 = arith.constant 6.400000e+01 : f32
    %28 = vector.broadcast %cst_30 : f32 to vector<16x1xf32>
    %29 = arith.divf %27, %28 : vector<16x1xf32>
    %cst_31 = arith.constant dense<0.000000e+00> : vector<4x1xf32>
    %30 = tpu.matmul %23, %29, %cst_31 {dimension_numbers = #tpu.dot_dimension_numbers<[1], [0], [0], [1], [0, 0, 1, 1], [], []>} : vector<4x16xf32>, vector<16x1xf32>, vector<4x1xf32> -> vector<4x1xf32>
    %cst_32 = arith.constant 0.000000e+00 : f32
    %31 = vector.broadcast %cst_32 : f32 to vector<4x1xf32>
    %32 = arith.cmpf oge, %30, %31 : vector<4x1xf32>
    %cst_33 = arith.constant 2.000000e-01 : f32
    %33 = vector.broadcast %cst_33 : f32 to vector<4x1xf32>
    %34 = arith.mulf %33, %30 : vector<4x1xf32>
    %35 = arith.select %32, %30, %34 : vector<4x1xi1>, vector<4x1xf32>
    %cst_34 = arith.constant dense<0.000000e+00> : vector<32x1xf32>
    %36 = tpu.matmul %24, %35, %cst_34 {dimension_numbers = #tpu.dot_dimension_numbers<[1], [0], [0], [1], [0, 0, 1, 1], [], []>} : vector<32x4xf32>, vector<4x1xf32>, vector<32x1xf32> -> vector<32x1xf32>
    %37 = vector.extract_strided_slice %36 {offsets = [0, 0], sizes = [16, 1], strides = [1, 1]} : vector<32x1xf32> to vector<16x1xf32>
    %38 = vector.extract_strided_slice %36 {offsets = [16, 0], sizes = [16, 1], strides = [1, 1]} : vector<32x1xf32> to vector<16x1xf32>
    %39 = arith.maximumf %37, %38 : vector<16x1xf32>
    %40 = arith.subf %37, %39 : vector<16x1xf32>
    %41 = math.exp %40 : vector<16x1xf32>
    %42 = arith.subf %38, %39 : vector<16x1xf32>
    %43 = math.exp %42 : vector<16x1xf32>
    %44 = arith.addf %41, %43 : vector<16x1xf32>
    %cst_35 = arith.constant 1.000000e+00 : f32
    %45 = vector.broadcast %cst_35 : f32 to vector<16x1xf32>
    %46 = arith.divf %45, %44 : vector<16x1xf32>
    %47 = arith.mulf %41, %46 : vector<16x1xf32>
    %48 = vector.broadcast %47 : vector<16x1xf32> to vector<16x64xf32>
    %49 = arith.mulf %22, %48 : vector<16x64xf32>
    %50 = arith.mulf %43, %46 : vector<16x1xf32>
    %51 = vector.broadcast %50 : vector<16x1xf32> to vector<16x64xf32>
    %52 = arith.mulf %13, %51 : vector<16x64xf32>
    %53 = arith.addf %49, %52 : vector<16x64xf32>
    %c0_36 = arith.constant 0 : index
    %c0_37 = arith.constant 0 : index
    %54 = vector.load %arg7[%c0_36, %c0_37] : memref<8x16xf32, #tpu.memory_space<vmem>>, vector<8x16xf32>
    %cst_38 = arith.constant dense<0.000000e+00> : vector<8x64xf32>
    %55 = tpu.matmul %54, %53, %cst_38 {dimension_numbers = #tpu.dot_dimension_numbers<[1], [0], [0], [1], [0, 0, 1, 1], [], []>} : vector<8x16xf32>, vector<16x64xf32>, vector<8x64xf32> -> vector<8x64xf32>
    %c0_39 = arith.constant 0 : index
    %c0_40 = arith.constant 0 : index
    %56 = vector.load %arg15[%c0_39, %c0_40] : memref<64x256xf32, #tpu.memory_space<vmem>>, vector<64x256xf32>
    %cst_41 = arith.constant dense<0.000000e+00> : vector<8x256xf32>
    %57 = tpu.matmul %55, %56, %cst_41 {dimension_numbers = #tpu.dot_dimension_numbers<[1], [0], [0], [1], [0, 0, 1, 1], [], []>} : vector<8x64xf32>, vector<64x256xf32>, vector<8x256xf32> -> vector<8x256xf32>
    %c0_42 = arith.constant 0 : index
    %c0_43 = arith.constant 0 : index
    %58 = vector.load %arg10[%c0_42, %c0_43] : memref<4x8xf32, #tpu.memory_space<vmem>>, vector<4x8xf32>
    %c0_44 = arith.constant 0 : index
    %c0_45 = arith.constant 0 : index
    %59 = vector.load %arg11[%c0_44, %c0_45] : memref<16x4xf32, #tpu.memory_space<vmem>>, vector<16x4xf32>
    %60 = arith.addf %57, %8 : vector<8x256xf32>
    %cst_46 = arith.constant dense<0.000000e+00> : vector<8xf32>
    %61 = vector.multi_reduction <add>, %60, %cst_46 [1] : vector<8x256xf32> to vector<8xf32>
    %62 = vector.shape_cast %61 : vector<8xf32> to vector<8x1xf32>
    %cst_47 = arith.constant 2.560000e+02 : f32
    %63 = vector.broadcast %cst_47 : f32 to vector<8x1xf32>
    %64 = arith.divf %62, %63 : vector<8x1xf32>
    %cst_48 = arith.constant dense<0.000000e+00> : vector<4x1xf32>
    %65 = tpu.matmul %58, %64, %cst_48 {dimension_numbers = #tpu.dot_dimension_numbers<[1], [0], [0], [1], [0, 0, 1, 1], [], []>} : vector<4x8xf32>, vector<8x1xf32>, vector<4x1xf32> -> vector<4x1xf32>
    %cst_49 = arith.constant 0.000000e+00 : f32
    %66 = vector.broadcast %cst_49 : f32 to vector<4x1xf32>
    %67 = arith.cmpf oge, %65, %66 : vector<4x1xf32>
    %cst_50 = arith.constant 2.000000e-01 : f32
    %68 = vector.broadcast %cst_50 : f32 to vector<4x1xf32>
    %69 = arith.mulf %68, %65 : vector<4x1xf32>
    %70 = arith.select %67, %65, %69 : vector<4x1xi1>, vector<4x1xf32>
    %cst_51 = arith.constant dense<0.000000e+00> : vector<16x1xf32>
    %71 = tpu.matmul %59, %70, %cst_51 {dimension_numbers = #tpu.dot_dimension_numbers<[1], [0], [0], [1], [0, 0, 1, 1], [], []>} : vector<16x4xf32>, vector<4x1xf32>, vector<16x1xf32> -> vector<16x1xf32>
    %72 = vector.extract_strided_slice %71 {offsets = [0, 0], sizes = [8, 1], strides = [1, 1]} : vector<16x1xf32> to vector<8x1xf32>
    %73 = vector.extract_strided_slice %71 {offsets = [8, 0], sizes = [8, 1], strides = [1, 1]} : vector<16x1xf32> to vector<8x1xf32>
    %74 = arith.maximumf %72, %73 : vector<8x1xf32>
    %75 = arith.subf %72, %74 : vector<8x1xf32>
    %76 = math.exp %75 : vector<8x1xf32>
    %77 = arith.subf %73, %74 : vector<8x1xf32>
    %78 = math.exp %77 : vector<8x1xf32>
    %79 = arith.addf %76, %78 : vector<8x1xf32>
    %cst_52 = arith.constant 1.000000e+00 : f32
    %80 = vector.broadcast %cst_52 : f32 to vector<8x1xf32>
    %81 = arith.divf %80, %79 : vector<8x1xf32>
    %82 = arith.mulf %76, %81 : vector<8x1xf32>
    %83 = vector.broadcast %82 : vector<8x1xf32> to vector<8x256xf32>
    %84 = arith.mulf %57, %83 : vector<8x256xf32>
    %85 = arith.mulf %78, %81 : vector<8x1xf32>
    %86 = vector.broadcast %85 : vector<8x1xf32> to vector<8x256xf32>
    %87 = arith.mulf %8, %86 : vector<8x256xf32>
    %88 = arith.addf %84, %87 : vector<8x256xf32>
    %c0_53 = arith.constant 0 : index
    %c0_54 = arith.constant 0 : index
    %c0_55 = arith.constant 0 : index
    %89 = vector.load %arg16[%c0_53, %c0_54, %c0_55] : memref<1x8x256xf32, #tpu.memory_space<vmem>>, vector<1x8x256xf32>
    %90 = vector.shape_cast %89 : vector<1x8x256xf32> to vector<8x256xf32>
    %91 = vector.shape_cast %88 : vector<8x256xf32> to vector<1x8x256xf32>
    tpu.vector_store %arg16[%c0_53, %c0_54, %c0_55], %91 {strides = array<i32>} : memref<1x8x256xf32, #tpu.memory_space<vmem>>, vector<1x8x256xf32>,
    return
  }
  func.func @transform_0(%arg0: i32) -> (i32, i32, i32) {
    %c0_i32 = arith.constant 0 : i32
    %c0_i32_0 = arith.constant 0 : i32
    %c0_i32_1 = arith.constant 0 : i32
    return %arg0, %c0_i32, %c0_i32_0 : i32, i32, i32
  }
  func.func @transform_1(%arg0: i32) -> (i32, i32) {
    %c0_i32 = arith.constant 0 : i32
    %c0_i32_0 = arith.constant 0 : i32
    %c0_i32_1 = arith.constant 0 : i32
    return %c0_i32, %c0_i32_0 : i32, i32
  }
  func.func @transform_2(%arg0: i32) -> (i32, i32) {
    %c0_i32 = arith.constant 0 : i32
    %c0_i32_0 = arith.constant 0 : i32
    %c0_i32_1 = arith.constant 0 : i32
    return %c0_i32, %c0_i32_0 : i32, i32
  }
  func.func @transform_3(%arg0: i32) -> (i32, i32) {
    %c0_i32 = arith.constant 0 : i32
    %c0_i32_0 = arith.constant 0 : i32
    %c0_i32_1 = arith.constant 0 : i32
    return %c0_i32, %c0_i32_0 : i32, i32
  }
  func.func @transform_4(%arg0: i32) -> (i32, i32) {
    %c0_i32 = arith.constant 0 : i32
    %c0_i32_0 = arith.constant 0 : i32
    %c0_i32_1 = arith.constant 0 : i32
    return %c0_i32, %c0_i32_0 : i32, i32
  }
  func.func @transform_5(%arg0: i32) -> (i32, i32) {
    %c0_i32 = arith.constant 0 : i32
    %c0_i32_0 = arith.constant 0 : i32
    %c0_i32_1 = arith.constant 0 : i32
    return %c0_i32, %c0_i32_0 : i32, i32
  }
  func.func @transform_6(%arg0: i32) -> (i32, i32) {
    %c0_i32 = arith.constant 0 : i32
    %c0_i32_0 = arith.constant 0 : i32
    %c0_i32_1 = arith.constant 0 : i32
    return %c0_i32, %c0_i32_0 : i32, i32
  }
  func.func @transform_7(%arg0: i32) -> (i32, i32) {
    %c0_i32 = arith.constant 0 : i32
    %c0_i32_0 = arith.constant 0 : i32
    %c0_i32_1 = arith.constant 0 : i32
    return %c0_i32, %c0_i32_0 : i32, i32
  }
  func.func @transform_8(%arg0: i32) -> (i32, i32) {
    %c0_i32 = arith.constant 0 : i32
    %c0_i32_0 = arith.constant 0 : i32
    %c0_i32_1 = arith.constant 0 : i32
    return %c0_i32, %c0_i32_0 : i32, i32
  }
  func.func @transform_9(%arg0: i32) -> (i32, i32) {
    %c0_i32 = arith.constant 0 : i32
    %c0_i32_0 = arith.constant 0 : i32
    %c0_i32_1 = arith.constant 0 : i32
    return %c0_i32, %c0_i32_0 : i32, i32
  }
  func.func @transform_10(%arg0: i32) -> (i32, i32) {
    %c0_i32 = arith.constant 0 : i32
    %c0_i32_0 = arith.constant 0 : i32
    %c0_i32_1 = arith.constant 0 : i32
    return %c0_i32, %c0_i32_0 : i32, i32
  }
  func.func @transform_11(%arg0: i32) -> (i32, i32) {
    %c0_i32 = arith.constant 0 : i32
    %c0_i32_0 = arith.constant 0 : i32
    %c0_i32_1 = arith.constant 0 : i32
    return %c0_i32, %c0_i32_0 : i32, i32
  }
  func.func @transform_12(%arg0: i32) -> (i32, i32) {
    %c0_i32 = arith.constant 0 : i32
    %c0_i32_0 = arith.constant 0 : i32
    %c0_i32_1 = arith.constant 0 : i32
    return %c0_i32, %c0_i32_0 : i32, i32
  }
  func.func @transform_13(%arg0: i32) -> (i32, i32) {
    %c0_i32 = arith.constant 0 : i32
    %c0_i32_0 = arith.constant 0 : i32
    %c0_i32_1 = arith.constant 0 : i32
    return %c0_i32, %c0_i32_0 : i32, i32
  }
  func.func @transform_14(%arg0: i32) -> (i32, i32) {
    %c0_i32 = arith.constant 0 : i32
    %c0_i32_0 = arith.constant 0 : i32
    %c0_i32_1 = arith.constant 0 : i32
    return %c0_i32, %c0_i32_0 : i32, i32
  }
  func.func @transform_15(%arg0: i32) -> (i32, i32, i32) {
    %c0_i32 = arith.constant 0 : i32
    %c0_i32_0 = arith.constant 0 : i32
    %c0_i32_1 = arith.constant 0 : i32
    return %arg0, %c0_i32, %c0_i32_0 : i32, i32, i32
  }
}

module attributes {stable_mosaic.version = 11 : i64} {
  func.func @_final_conv_kernel(%arg0: i32, %arg1: memref<1x72x256xf32, #tpu.memory_space<vmem>>, %arg2: memref<3x72xf32, #tpu.memory_space<vmem>>, %arg3: memref<3x1xf32, #tpu.memory_space<vmem>>, %arg4: memref<1x3x256xf32, #tpu.memory_space<vmem>>) attributes {dimension_semantics = [#tpu.dimension_semantics<parallel>], iteration_bounds = array<i64: 2>, scalar_prefetch = 0 : i64, scratch_operands = 0 : i64, tpu.core_type = #tpu.core_type<tc>, window_params = [{transform_indices = @transform_0, window_bounds = array<i64: 1, 72, 256>}, {pipeline_mode = #tpu.pipeline_mode<synchronous>, transform_indices = @transform_1, window_bounds = array<i64: 3, 72>}, {pipeline_mode = #tpu.pipeline_mode<synchronous>, transform_indices = @transform_2, window_bounds = array<i64: 3, 1>}, {transform_indices = @transform_3, window_bounds = array<i64: 1, 3, 256>}]} {
    %c0 = arith.constant 0 : index
    %c0_0 = arith.constant 0 : index
    %0 = vector.load %arg2[%c0, %c0_0] : memref<3x72xf32, #tpu.memory_space<vmem>>, vector<3x72xf32>
    %c0_1 = arith.constant 0 : index
    %c0_2 = arith.constant 0 : index
    %c0_3 = arith.constant 0 : index
    %1 = vector.load %arg1[%c0_1, %c0_2, %c0_3] : memref<1x72x256xf32, #tpu.memory_space<vmem>>, vector<1x72x256xf32>
    %2 = vector.shape_cast %1 : vector<1x72x256xf32> to vector<72x256xf32>
    %cst = arith.constant dense<0.000000e+00> : vector<3x256xf32>
    %3 = tpu.matmul %0, %2, %cst {dimension_numbers = #tpu.dot_dimension_numbers<[1], [0], [0], [1], [0, 0, 1, 1], [], []>} : vector<3x72xf32>, vector<72x256xf32>, vector<3x256xf32> -> vector<3x256xf32>
    %c0_4 = arith.constant 0 : index
    %c0_5 = arith.constant 0 : index
    %4 = vector.load %arg3[%c0_4, %c0_5] : memref<3x1xf32, #tpu.memory_space<vmem>>, vector<3x1xf32>
    %5 = vector.broadcast %4 : vector<3x1xf32> to vector<3x256xf32>
    %6 = arith.addf %3, %5 : vector<3x256xf32>
    %7 = math.tanh %6 : vector<3x256xf32>
    %c0_6 = arith.constant 0 : index
    %c0_7 = arith.constant 0 : index
    %c0_8 = arith.constant 0 : index
    %8 = vector.load %arg4[%c0_6, %c0_7, %c0_8] : memref<1x3x256xf32, #tpu.memory_space<vmem>>, vector<1x3x256xf32>
    %9 = vector.shape_cast %8 : vector<1x3x256xf32> to vector<3x256xf32>
    %10 = vector.shape_cast %7 : vector<3x256xf32> to vector<1x3x256xf32>
    tpu.vector_store %arg4[%c0_6, %c0_7, %c0_8], %10 {strides = array<i32>} : memref<1x3x256xf32, #tpu.memory_space<vmem>>, vector<1x3x256xf32>,
    return
  }
  func.func @transform_0(%arg0: i32) -> (i32, i32, i32) {
    %c0_i32 = arith.constant 0 : i32
    %c0_i32_0 = arith.constant 0 : i32
    %c0_i32_1 = arith.constant 0 : i32
    return %arg0, %c0_i32, %c0_i32_0 : i32, i32, i32
  }
  func.func @transform_1(%arg0: i32) -> (i32, i32) {
    %c0_i32 = arith.constant 0 : i32
    %c0_i32_0 = arith.constant 0 : i32
    %c0_i32_1 = arith.constant 0 : i32
    return %c0_i32, %c0_i32_0 : i32, i32
  }
  func.func @transform_2(%arg0: i32) -> (i32, i32) {
    %c0_i32 = arith.constant 0 : i32
    %c0_i32_0 = arith.constant 0 : i32
    %c0_i32_1 = arith.constant 0 : i32
    return %c0_i32, %c0_i32_0 : i32, i32
  }
  func.func @transform_3(%arg0: i32) -> (i32, i32, i32) {
    %c0_i32 = arith.constant 0 : i32
    %c0_i32_0 = arith.constant 0 : i32
    %c0_i32_1 = arith.constant 0 : i32
    return %arg0, %c0_i32, %c0_i32_0 : i32, i32, i32
  }
}

</mosaic_0001>

<llo_original>
// kernel: hr_branch_forward.2
$region0: #{hr_branch_forward.2}
  #allocation0 [shape = 'u32[]', space=smem, size = 0x4, offset = 0x4, fixed_abs, tag = 'smem constant byte address 0x4 - core index']
  #allocation1 [shape = 'u32[144,128]{1,0:T(1,128)}', space=vmem, size = 0x12000, scoped, tag = 'internal scratch']
  %s0 = inlined_call_operand.vmem [shape: f32[2,27,256], index: 0, kind: input, shape index: {}]
  %s1 = inlined_call_operand.vmem [shape: f32[8,27], index: 1, kind: input, shape index: {}]
  %s2 = inlined_call_operand.vmem [shape: f32[8,1], index: 2, kind: input, shape index: {}]
  %s3 = inlined_call_operand.vmem [shape: f32[32,8], index: 3, kind: input, shape index: {}]
  %s4 = inlined_call_operand.vmem [shape: f32[32,16], index: 4, kind: input, shape index: {}]
  %s5 = inlined_call_operand.vmem [shape: f32[16,32], index: 5, kind: input, shape index: {}]
  %s6 = inlined_call_operand.vmem [shape: f32[8,16], index: 6, kind: input, shape index: {}]
  %s7 = inlined_call_operand.vmem [shape: f32[4,16], index: 7, kind: input, shape index: {}]
  %s8 = inlined_call_operand.vmem [shape: f32[32,4], index: 8, kind: input, shape index: {}]
  %s9 = inlined_call_operand.vmem [shape: f32[4,8], index: 9, kind: input, shape index: {}]
  %s10 = inlined_call_operand.vmem [shape: f32[16,4], index: 10, kind: input, shape index: {}]
  %s11 = inlined_call_operand.vmem [shape: f32[256,64], index: 11, kind: input, shape index: {}]
  %s12 = inlined_call_operand.vmem [shape: f32[64,16], index: 12, kind: input, shape index: {}]
  %s13 = inlined_call_operand.vmem [shape: f32[16,64], index: 13, kind: input, shape index: {}]
  %s14 = inlined_call_operand.vmem [shape: f32[64,256], index: 14, kind: input, shape index: {}]
  %s15 = inlined_call_operand.vmem [shape: f32[2,8,256], index: 15, kind: output, shape index: {}]
  %s16 = sld [smem:[#allocation0]]
  $region93: #{hr_branch_forward.2} parent=0
    _
  %s18 = ssub.s32 1, %s16
  %s19 = scalar_select 0, %s18, %s16
  loop: start=0, step=1, limit=4
  $region2: #{hr_branch_forward.2} parent=0 // loop_pre_header
    _
  $region3: #{hr_branch_forward.2} parent=0 // loop_header
    %s21 = sphi 0, %s25
    %p22 = scmp.ge.s32.totalorder %s21, 4
    %s31 = sphi 0, %s33
    %s34 = sphi 0, %s31
    %s35 = sphi 0, %s34
    %s51 = sphi 0, %s35
    %s55 = sphi 0, %s55
    %s57 = sphi 0, %s55
    %s58 = sphi 0, %s57
    %s72 = sphi 0, %s58
    %s76 = sphi 0, %s76
    %s78 = sphi 0, %s76
    %s79 = sphi 0, %s78
    %s93 = sphi 0, %s79
    %s97 = sphi 0, %s97
    %s99 = sphi 0, %s97
    %s100 = sphi 0, %s99
    %s114 = sphi 0, %s100
    %s118 = sphi 0, %s118
    %s120 = sphi 0, %s118
    %s121 = sphi 0, %s120
    %s135 = sphi 0, %s121
    %s139 = sphi 0, %s139
    %s141 = sphi 0, %s139
    %s142 = sphi 0, %s141
    %s156 = sphi 0, %s142
    %s160 = sphi 0, %s160
    %s162 = sphi 0, %s160
    %s163 = sphi 0, %s162
    %s177 = sphi 0, %s163
    %s181 = sphi 0, %s181
    %s183 = sphi 0, %s181
    %s184 = sphi 0, %s183
    %s198 = sphi 0, %s184
    %s202 = sphi 0, %s202
    %s204 = sphi 0, %s202
    %s205 = sphi 0, %s204
    %s219 = sphi 0, %s205
    %s223 = sphi 0, %s223
    %s225 = sphi 0, %s223
    %s226 = sphi 0, %s225
    %s240 = sphi 0, %s226
    %s244 = sphi 0, %s244
    %s246 = sphi 0, %s244
    %s247 = sphi 0, %s246
    %s261 = sphi 0, %s247
    %s265 = sphi 0, %s265
    %s267 = sphi 0, %s265
    %s268 = sphi 0, %s267
    %s282 = sphi 0, %s268
    %s286 = sphi 0, %s286
    %s288 = sphi 0, %s286
    %s289 = sphi 0, %s288
    %s303 = sphi 0, %s289
    %s307 = sphi 0, %s307
    %s309 = sphi 0, %s307
    %s310 = sphi 0, %s309
    %s324 = sphi 0, %s310
    %s328 = sphi 0, %s328
    %s330 = sphi 0, %s328
    %s331 = sphi 0, %s330
    %s345 = sphi 0, %s331
    %s351 = sphi 0, %s353
    %s354 = sphi 0, %s351
    %s355 = sphi 0, %s354
    %s371 = sphi 0, %s355
  $region4: #{hr_branch_forward.2} parent=0 // loop_header_branch
    %24 = sbr.rel (%p22) target = $region8
  $region5: #{hr_branch_forward.2} parent=0 // loop_body
    %s26 = ssub.s32 %s21, 1
    %s27 = ssub.s32 %s21, 2
    %s28 = sadd.s32 %s21, 1
    %s29 = ssub.s32 %s21, %s28
    %p30 = scmp.eq.s32.totalorder %s29, 0
    %s32 = sadd.s32 %s31, 1
    %s33 = scalar_select %p30, %s31, %s32
    %p36 = pneg %p30
    %p37 = scmp.eq.s32.totalorder %s21, 1
    %p38 = por %p36, %p37
    %p39 = scmp.ne.s32.totalorder %s31, %s34
    %p40 = scmp.eq.s32.totalorder %s21, 0
    %p41 = por %p39, %p40
    %p42 = scmp.ne.s32.totalorder %s31, %s34
    %p43 = scmp.eq.s32.totalorder %s26, 1
    %p44 = por %p42, %p43
    %p45 = scmp.ne.s32.totalorder %s34, %s35
    %p46 = scmp.eq.s32.totalorder %s26, 0
    %p47 = por %p45, %p46
    %p48 = scmp.ne.s32.totalorder %s34, %s35
    %p49 = scmp.eq.s32.totalorder %s27, 1
    %p50 = por %p48, %p49
    %p52 = scmp.ne.s32.totalorder %s35, %s51
    %p53 = scmp.eq.s32.totalorder %s27, 0
    %p54 = por %p52, %p53
    %s56 = sadd.s32 %s55, 1
    %p59 = scmp.eq.s32.totalorder %s21, 1
    %p60 = scmp.ne.s32.totalorder %s55, %s57
    %p61 = scmp.eq.s32.totalorder %s21, 0
    %p62 = por %p60, %p61
    %p63 = scmp.ne.s32.totalorder %s55, %s57
    %p64 = scmp.eq.s32.totalorder %s26, 1
    %p65 = por %p63, %p64
    %p66 = scmp.ne.s32.totalorder %s57, %s58
    %p67 = scmp.eq.s32.totalorder %s26, 0
    %p68 = por %p66, %p67
    %p69 = scmp.ne.s32.totalorder %s57, %s58
    %p70 = scmp.eq.s32.totalorder %s27, 1
    %p71 = por %p69, %p70
    %p73 = scmp.ne.s32.totalorder %s58, %s72
    %p74 = scmp.eq.s32.totalorder %s27, 0
    %p75 = por %p73, %p74
    %s77 = sadd.s32 %s76, 1
    %p80 = scmp.eq.s32.totalorder %s21, 1
    %p81 = scmp.ne.s32.totalorder %s76, %s78
    %p82 = scmp.eq.s32.totalorder %s21, 0
    %p83 = por %p81, %p82
    %p84 = scmp.ne.s32.totalorder %s76, %s78
    %p85 = scmp.eq.s32.totalorder %s26, 1
    %p86 = por %p84, %p85
    %p87 = scmp.ne.s32.totalorder %s78, %s79
    %p88 = scmp.eq.s32.totalorder %s26, 0
    %p89 = por %p87, %p88
    %p90 = scmp.ne.s32.totalorder %s78, %s79
    %p91 = scmp.eq.s32.totalorder %s27, 1
    %p92 = por %p90, %p91
    %p94 = scmp.ne.s32.totalorder %s79, %s93
    %p95 = scmp.eq.s32.totalorder %s27, 0
    %p96 = por %p94, %p95
    %s98 = sadd.s32 %s97, 1
    %p101 = scmp.eq.s32.totalorder %s21, 1
    %p102 = scmp.ne.s32.totalorder %s97, %s99
    %p103 = scmp.eq.s32.totalorder %s21, 0
    %p104 = por %p102, %p103
    %p105 = scmp.ne.s32.totalorder %s97, %s99
    %p106 = scmp.eq.s32.totalorder %s26, 1
    %p107 = por %p105, %p106
    %p108 = scmp.ne.s32.totalorder %s99, %s100
    %p109 = scmp.eq.s32.totalorder %s26, 0
    %p110 = por %p108, %p109
    %p111 = scmp.ne.s32.totalorder %s99, %s100
    %p112 = scmp.eq.s32.totalorder %s27, 1
    %p113 = por %p111, %p112
    %p115 = scmp.ne.s32.totalorder %s100, %s114
    %p116 = scmp.eq.s32.totalorder %s27, 0
    %p117 = por %p115, %p116
    %s119 = sadd.s32 %s118, 1
    %p122 = scmp.eq.s32.totalorder %s21, 1
    %p123 = scmp.ne.s32.totalorder %s118, %s120
    %p124 = scmp.eq.s32.totalorder %s21, 0
    %p125 = por %p123, %p124
    %p126 = scmp.ne.s32.totalorder %s118, %s120
    %p127 = scmp.eq.s32.totalorder %s26, 1
    %p128 = por %p126, %p127
    %p129 = scmp.ne.s32.totalorder %s120, %s121
    %p130 = scmp.eq.s32.totalorder %s26, 0
    %p131 = por %p129, %p130
    %p132 = scmp.ne.s32.totalorder %s120, %s121
    %p133 = scmp.eq.s32.totalorder %s27, 1
    %p134 = por %p132, %p133
    %p136 = scmp.ne.s32.totalorder %s121, %s135
    %p137 = scmp.eq.s32.totalorder %s27, 0
    %p138 = por %p136, %p137
    %s140 = sadd.s32 %s139, 1
    %p143 = scmp.eq.s32.totalorder %s21, 1
    %p144 = scmp.ne.s32.totalorder %s139, %s141
    %p145 = scmp.eq.s32.totalorder %s21, 0
    %p146 = por %p144, %p145
    %p147 = scmp.ne.s32.totalorder %s139, %s141
    %p148 = scmp.eq.s32.totalorder %s26, 1
    %p149 = por %p147, %p148
    %p150 = scmp.ne.s32.totalorder %s141, %s142
    %p151 = scmp.eq.s32.totalorder %s26, 0
    %p152 = por %p150, %p151
    %p153 = scmp.ne.s32.totalorder %s141, %s142
    %p154 = scmp.eq.s32.totalorder %s27, 1
    %p155 = por %p153, %p154
    %p157 = scmp.ne.s32.totalorder %s142, %s156
    %p158 = scmp.eq.s32.totalorder %s27, 0
    %p159 = por %p157, %p158
    %s161 = sadd.s32 %s160, 1
    %p164 = scmp.eq.s32.totalorder %s21, 1
    %p165 = scmp.ne.s32.totalorder %s160, %s162
    %p166 = scmp.eq.s32.totalorder %s21, 0
    %p167 = por %p165, %p166
    %p168 = scmp.ne.s32.totalorder %s160, %s162
    %p169 = scmp.eq.s32.totalorder %s26, 1
    %p170 = por %p168, %p169
    %p171 = scmp.ne.s32.totalorder %s162, %s163
    %p172 = scmp.eq.s32.totalorder %s26, 0
    %p173 = por %p171, %p172
    %p174 = scmp.ne.s32.totalorder %s162, %s163
    %p175 = scmp.eq.s32.totalorder %s27, 1
    %p176 = por %p174, %p175
    %p178 = scmp.ne.s32.totalorder %s163, %s177
    %p179 = scmp.eq.s32.totalorder %s27, 0
    %p180 = por %p178, %p179
    %s182 = sadd.s32 %s181, 1
    %p185 = scmp.eq.s32.totalorder %s21, 1
    %p186 = scmp.ne.s32.totalorder %s181, %s183
    %p187 = scmp.eq.s32.totalorder %s21, 0
    %p188 = por %p186, %p187
    %p189 = scmp.ne.s32.totalorder %s181, %s183
    %p190 = scmp.eq.s32.totalorder %s26, 1
    %p191 = por %p189, %p190
    %p192 = scmp.ne.s32.totalorder %s183, %s184
    %p193 = scmp.eq.s32.totalorder %s26, 0
    %p194 = por %p192, %p193
    %p195 = scmp.ne.s32.totalorder %s183, %s184
    %p196 = scmp.eq.s32.totalorder %s27, 1
    %p197 = por %p195, %p196
    %p199 = scmp.ne.s32.totalorder %s184, %s198
    %p200 = scmp.eq.s32.totalorder %s27, 0
    %p201 = por %p199, %p200
    %s203 = sadd.s32 %s202, 1
    %p206 = scmp.eq.s32.totalorder %s21, 1
    %p207 = scmp.ne.s32.totalorder %s202, %s204
    %p208 = scmp.eq.s32.totalorder %s21, 0
    %p209 = por %p207, %p208
    %p210 = scmp.ne.s32.totalorder %s202, %s204
    %p211 = scmp.eq.s32.totalorder %s26, 1
    %p212 = por %p210, %p211
    %p213 = scmp.ne.s32.totalorder %s204, %s205
    %p214 = scmp.eq.s32.totalorder %s26, 0
    %p215 = por %p213, %p214
    %p216 = scmp.ne.s32.totalorder %s204, %s205
    %p217 = scmp.eq.s32.totalorder %s27, 1
    %p218 = por %p216, %p217
    %p220 = scmp.ne.s32.totalorder %s205, %s219
    %p221 = scmp.eq.s32.totalorder %s27, 0
    %p222 = por %p220, %p221
    %s224 = sadd.s32 %s223, 1
    %p227 = scmp.eq.s32.totalorder %s21, 1
    %p228 = scmp.ne.s32.totalorder %s223, %s225
    %p229 = scmp.eq.s32.totalorder %s21, 0
    %p230 = por %p228, %p229
    %p231 = scmp.ne.s32.totalorder %s223, %s225
    %p232 = scmp.eq.s32.totalorder %s26, 1
    %p233 = por %p231, %p232
    %p234 = scmp.ne.s32.totalorder %s225, %s226
    %p235 = scmp.eq.s32.totalorder %s26, 0
    %p236 = por %p234, %p235
    %p237 = scmp.ne.s32.totalorder %s225, %s226
    %p238 = scmp.eq.s32.totalorder %s27, 1
    %p239 = por %p237, %p238
    %p241 = scmp.ne.s32.totalorder %s226, %s240
    %p242 = scmp.eq.s32.totalorder %s27, 0
    %p243 = por %p241, %p242
    %s245 = sadd.s32 %s244, 1
    %p248 = scmp.eq.s32.totalorder %s21, 1
    %p249 = scmp.ne.s32.totalorder %s244, %s246
    %p250 = scmp.eq.s32.totalorder %s21, 0
    %p251 = por %p249, %p250
    %p252 = scmp.ne.s32.totalorder %s244, %s246
    %p253 = scmp.eq.s32.totalorder %s26, 1
    %p254 = por %p252, %p253
    %p255 = scmp.ne.s32.totalorder %s246, %s247
    %p256 = scmp.eq.s32.totalorder %s26, 0
    %p257 = por %p255, %p256
    %p258 = scmp.ne.s32.totalorder %s246, %s247
    %p259 = scmp.eq.s32.totalorder %s27, 1
    %p260 = por %p258, %p259
    %p262 = scmp.ne.s32.totalorder %s247, %s261
    %p263 = scmp.eq.s32.totalorder %s27, 0
    %p264 = por %p262, %p263
    %s266 = sadd.s32 %s265, 1
    %p269 = scmp.eq.s32.totalorder %s21, 1
    %p270 = scmp.ne.s32.totalorder %s265, %s267
    %p271 = scmp.eq.s32.totalorder %s21, 0
    %p272 = por %p270, %p271
    %p273 = scmp.ne.s32.totalorder %s265, %s267
    %p274 = scmp.eq.s32.totalorder %s26, 1
    %p275 = por %p273, %p274
    %p276 = scmp.ne.s32.totalorder %s267, %s268
    %p277 = scmp.eq.s32.totalorder %s26, 0
    %p278 = por %p276, %p277
    %p279 = scmp.ne.s32.totalorder %s267, %s268
    %p280 = scmp.eq.s32.totalorder %s27, 1
    %p281 = por %p279, %p280
    %p283 = scmp.ne.s32.totalorder %s268, %s282
    %p284 = scmp.eq.s32.totalorder %s27, 0
    %p285 = por %p283, %p284
    %s287 = sadd.s32 %s286, 1
    %p290 = scmp.eq.s32.totalorder %s21, 1
    %p291 = scmp.ne.s32.totalorder %s286, %s288
    %p292 = scmp.eq.s32.totalorder %s21, 0
    %p293 = por %p291, %p292
    %p294 = scmp.ne.s32.totalorder %s286, %s288
    %p295 = scmp.eq.s32.totalorder %s26, 1
    %p296 = por %p294, %p295
    %p297 = scmp.ne.s32.totalorder %s288, %s289
    %p298 = scmp.eq.s32.totalorder %s26, 0
    %p299 = por %p297, %p298
    %p300 = scmp.ne.s32.totalorder %s288, %s289
    %p301 = scmp.eq.s32.totalorder %s27, 1
    %p302 = por %p300, %p301
    %p304 = scmp.ne.s32.totalorder %s289, %s303
    %p305 = scmp.eq.s32.totalorder %s27, 0
    %p306 = por %p304, %p305
    %s308 = sadd.s32 %s307, 1
    %p311 = scmp.eq.s32.totalorder %s21, 1
    %p312 = scmp.ne.s32.totalorder %s307, %s309
    %p313 = scmp.eq.s32.totalorder %s21, 0
    %p314 = por %p312, %p313
    %p315 = scmp.ne.s32.totalorder %s307, %s309
    %p316 = scmp.eq.s32.totalorder %s26, 1
    %p317 = por %p315, %p316
    %p318 = scmp.ne.s32.totalorder %s309, %s310
    %p319 = scmp.eq.s32.totalorder %s26, 0
    %p320 = por %p318, %p319
    %p321 = scmp.ne.s32.totalorder %s309, %s310
    %p322 = scmp.eq.s32.totalorder %s27, 1
    %p323 = por %p321, %p322
    %p325 = scmp.ne.s32.totalorder %s310, %s324
    %p326 = scmp.eq.s32.totalorder %s27, 0
    %p327 = por %p325, %p326
    %s329 = sadd.s32 %s328, 1
    %p332 = scmp.eq.s32.totalorder %s21, 1
    %p333 = scmp.ne.s32.totalorder %s328, %s330
    %p334 = scmp.eq.s32.totalorder %s21, 0
    %p335 = por %p333, %p334
    %p336 = scmp.ne.s32.totalorder %s328, %s330
    %p337 = scmp.eq.s32.totalorder %s26, 1
    %p338 = por %p336, %p337
    %p339 = scmp.ne.s32.totalorder %s330, %s331
    %p340 = scmp.eq.s32.totalorder %s26, 0
    %p341 = por %p339, %p340
    %p342 = scmp.ne.s32.totalorder %s330, %s331
    %p343 = scmp.eq.s32.totalorder %s27, 1
    %p344 = por %p342, %p343
    %p346 = scmp.ne.s32.totalorder %s331, %s345
    %p347 = scmp.eq.s32.totalorder %s27, 0
    %p348 = por %p346, %p347
    %s349 = ssub.s32 %s21, %s28
    %p350 = scmp.eq.s32.totalorder %s349, 0
    %s352 = sadd.s32 %s351, 1
    %s353 = scalar_select %p350, %s351, %s352
    %p356 = pneg %p350
    %p357 = scmp.eq.s32.totalorder %s21, 1
    %p358 = por %p356, %p357
    %p359 = scmp.ne.s32.totalorder %s351, %s354
    %p360 = scmp.eq.s32.totalorder %s21, 0
    %p361 = por %p359, %p360
    %p362 = scmp.ne.s32.totalorder %s351, %s354
    %p363 = scmp.eq.s32.totalorder %s26, 1
    %p364 = por %p362, %p363
    %p365 = scmp.ne.s32.totalorder %s354, %s355
    %p366 = scmp.eq.s32.totalorder %s26, 0
    %p367 = por %p365, %p366
    %p368 = scmp.ne.s32.totalorder %s354, %s355
    %p369 = scmp.eq.s32.totalorder %s27, 1
    %p370 = por %p368, %p369
    %p372 = scmp.ne.s32.totalorder %s355, %s371
    %p373 = scmp.eq.s32.totalorder %s27, 0
    %p374 = por %p372, %p373
    %p375 = scmp.le.s32.totalorder 1, %s21
    %p376 = scmp.lt.s32.totalorder %s21, 3
    %p377 = pnand %p375, %p376
    %p378 = pneg %p377
    // Predicated region
    $region9: #{hr_branch_forward.2} parent=5 // pred_check
      _
    $region10: #{hr_branch_forward.2} parent=5 // pred_check_branch
      %380 = sbr.rel (%p377) target = $region12
    $region11: #{hr_branch_forward.2} parent=5 // pred_region
      %s381 = ssub.s32 %s21, 1
      // Predicated region
      $region13: #{hr_branch_forward.2} parent=11 // pred_check
        %p382 = pneg %p68
      $region14: #{hr_branch_forward.2} parent=11 // pred_check_branch
        %384 = sbr.rel (%p382) target = $region16
      $region15: #{hr_branch_forward.2} parent=11 // pred_region
        _
      $region16: #{hr_branch_forward.2} parent=11 // pred_fallthru
        _
      // Predicated region
      $region17: #{hr_branch_forward.2} parent=11 // pred_check
        %p385 = pneg %p89
      $region18: #{hr_branch_forward.2} parent=11 // pred_check_branch
        %387 = sbr.rel (%p385) target = $region20
      $region19: #{hr_branch_forward.2} parent=11 // pred_region
        _
      $region20: #{hr_branch_forward.2} parent=11 // pred_fallthru
        _
      // Predicated region
      $region21: #{hr_branch_forward.2} parent=11 // pred_check
        %p388 = pneg %p110
      $region22: #{hr_branch_forward.2} parent=11 // pred_check_branch
        %390 = sbr.rel (%p388) target = $region24
      $region23: #{hr_branch_forward.2} parent=11 // pred_region
        _
      $region24: #{hr_branch_forward.2} parent=11 // pred_fallthru
        _
      // Predicated region
      $region25: #{hr_branch_forward.2} parent=11 // pred_check
        %p391 = pneg %p131
      $region26: #{hr_branch_forward.2} parent=11 // pred_check_branch
        %393 = sbr.rel (%p391) target = $region28
      $region27: #{hr_branch_forward.2} parent=11 // pred_region
        _
      $region28: #{hr_branch_forward.2} parent=11 // pred_fallthru
        _
      // Predicated region
      $region29: #{hr_branch_forward.2} parent=11 // pred_check
        %p394 = pneg %p152
      $region30: #{hr_branch_forward.2} parent=11 // pred_check_branch
        %396 = sbr.rel (%p394) target = $region32
      $region31: #{hr_branch_forward.2} parent=11 // pred_region
        _
      $region32: #{hr_branch_forward.2} parent=11 // pred_fallthru
        _
      // Predicated region
      $region33: #{hr_branch_forward.2} parent=11 // pred_check
        %p397 = pneg %p173
      $region34: #{hr_branch_forward.2} parent=11 // pred_check_branch
        %399 = sbr.rel (%p397) target = $region36
      $region35: #{hr_branch_forward.2} parent=11 // pred_region
        _
      $region36: #{hr_branch_forward.2} parent=11 // pred_fallthru
        _
      // Predicated region
      $region37: #{hr_branch_forward.2} parent=11 // pred_check
        %p400 = pneg %p194
      $region38: #{hr_branch_forward.2} parent=11 // pred_check_branch
        %402 = sbr.rel (%p400) target = $region40
      $region39: #{hr_branch_forward.2} parent=11 // pred_region
        _
      $region40: #{hr_branch_forward.2} parent=11 // pred_fallthru
        _
      // Predicated region
      $region41: #{hr_branch_forward.2} parent=11 // pred_check
        %p403 = pneg %p215
      $region42: #{hr_branch_forward.2} parent=11 // pred_check_branch
        %405 = sbr.rel (%p403) target = $region44
      $region43: #{hr_branch_forward.2} parent=11 // pred_region
        _
      $region44: #{hr_branch_forward.2} parent=11 // pred_fallthru
        _
      // Predicated region
      $region45: #{hr_branch_forward.2} parent=11 // pred_check
        %p406 = pneg %p236
      $region46: #{hr_branch_forward.2} parent=11 // pred_check_branch
        %408 = sbr.rel (%p406) target = $region48
      $region47: #{hr_branch_forward.2} parent=11 // pred_region
        _
      $region48: #{hr_branch_forward.2} parent=11 // pred_fallthru
        _
      // Predicated region
      $region49: #{hr_branch_forward.2} parent=11 // pred_check
        %p409 = pneg %p257
      $region50: #{hr_branch_forward.2} parent=11 // pred_check_branch
        %411 = sbr.rel (%p409) target = $region52
      $region51: #{hr_branch_forward.2} parent=11 // pred_region
        _
      $region52: #{hr_branch_forward.2} parent=11 // pred_fallthru
        _
      // Predicated region
      $region53: #{hr_branch_forward.2} parent=11 // pred_check
        %p412 = pneg %p278
      $region54: #{hr_branch_forward.2} parent=11 // pred_check_branch
        %414 = sbr.rel (%p412) target = $region56
      $region55: #{hr_branch_forward.2} parent=11 // pred_region
        _
      $region56: #{hr_branch_forward.2} parent=11 // pred_fallthru
        _
      // Predicated region
      $region57: #{hr_branch_forward.2} parent=11 // pred_check
        %p415 = pneg %p299
      $region58: #{hr_branch_forward.2} parent=11 // pred_check_branch
        %417 = sbr.rel (%p415) target = $region60
      $region59: #{hr_branch_forward.2} parent=11 // pred_region
        _
      $region60: #{hr_branch_forward.2} parent=11 // pred_fallthru
        _
      // Predicated region
      $region61: #{hr_branch_forward.2} parent=11 // pred_check
        %p418 = pneg %p320
      $region62: #{hr_branch_forward.2} parent=11 // pred_check_branch
        %420 = sbr.rel (%p418) target = $region64
      $region63: #{hr_branch_forward.2} parent=11 // pred_region
        _
      $region64: #{hr_branch_forward.2} parent=11 // pred_fallthru
        _
      // Predicated region
      $region65: #{hr_branch_forward.2} parent=11 // pred_check
        %p421 = pneg %p341
      $region66: #{hr_branch_forward.2} parent=11 // pred_check_branch
        %423 = sbr.rel (%p421) target = $region68
      $region67: #{hr_branch_forward.2} parent=11 // pred_region
        _
      $region68: #{hr_branch_forward.2} parent=11 // pred_fallthru
        _
    $region12: #{hr_branch_forward.2} parent=5 // pred_fallthru
      _
    %p424 = scmp.lt.s32.totalorder %s21, 2
    // Predicated region
    $region69: #{hr_branch_forward.2} parent=5 // pred_check
      %p425 = pneg %p424
    $region70: #{hr_branch_forward.2} parent=5 // pred_check_branch
      %427 = sbr.rel (%p425) target = $region72
    $region71: #{hr_branch_forward.2} parent=5 // pred_region
      // Predicated region
      $region73: #{hr_branch_forward.2} parent=71 // pred_check
        %p428 = pneg %p41
      $region74: #{hr_branch_forward.2} parent=71 // pred_check_branch
        %430 = sbr.rel (%p428) target = $region76
      $region75: #{hr_branch_forward.2} parent=71 // pred_region
        %p431 = scmp.lt.s32.totalorder %s21, 1
        %s432 = scalar_select %p431, %s21, 1
        %s433 = smul.addr %s432, 8
        %s434 = smul.addr %s433, 8
        %s435 = scalar_lea.vmem %s0, %s434
      $region76: #{hr_branch_forward.2} parent=71 // pred_fallthru
        _
    $region72: #{hr_branch_forward.2} parent=5 // pred_fallthru
      _
    %p436 = scmp.le.s32.totalorder 1, %s21
    %p437 = scmp.lt.s32.totalorder %s21, 3
    %p438 = pnand %p436, %p437
    %p439 = pneg %p438
    // Predicated region
    $region77: #{hr_branch_forward.2} parent=5 // pred_check
      _
    $region78: #{hr_branch_forward.2} parent=5 // pred_check_branch
      %441 = sbr.rel (%p438) target = $region80
    $region79: #{hr_branch_forward.2} parent=5 // pred_region
      %s442 = ssub.s32 %s21, 1
      %p443 = scmp.lt.s32.totalorder %s26, 1
      %s444 = scalar_select %p443, %s26, 1
      %s445 = smul.addr %s444, 8
      %s446 = smul.addr %s445, 8
      %s447 = scalar_lea.vmem %s0, %s446
      %p448 = pneg %p47
      %p449 = pneg %p44
      %p450 = pneg %p68
      %p451 = pneg %p65
      %p452 = pneg %p89
      %p453 = pneg %p86
      %p454 = pneg %p110
      %p455 = pneg %p107
      %p456 = pneg %p131
      %p457 = pneg %p128
      %p458 = pneg %p152
      %p459 = pneg %p149
      %p460 = pneg %p173
      %p461 = pneg %p170
      %p462 = pneg %p194
      %p463 = pneg %p191
      %p464 = pneg %p215
      %p465 = pneg %p212
      %p466 = pneg %p236
      %p467 = pneg %p233
      %p468 = pneg %p257
      %p469 = pneg %p254
      %p470 = pneg %p278
      %p471 = pneg %p275
      %p472 = pneg %p299
      %p473 = pneg %p296
      %p474 = pneg %p320
      %p475 = pneg %p317
      %p476 = pneg %p341
      %p477 = pneg %p338
      %p478 = pneg %p367
      %p479 = pneg %p364
      %p480 = scmp.lt.s32.totalorder %s26, 1
      %s481 = scalar_select %p480, %s26, 1
      %s482 = smul.addr %s481, 2
      %s483 = smul.addr %s482, 8
      %s484 = scalar_lea.vmem %s15, %s483
      %p485 = scmp.lt.s32.totalorder %s26, 1
      %s486 = scalar_select %p485, %s26, 1
      %s487 = smul.addr %s486, 8
      %s488 = smul.addr %s487, 8
      %s489 = scalar_lea.vmem %s0, %s488
      %p490 = scmp.lt.s32.totalorder %s26, 1
      %s491 = scalar_select %p490, %s26, 1
      %s492 = smul.addr %s491, 2
      %s493 = smul.addr %s492, 8
      %s494 = scalar_lea.vmem %s15, %s493
      %v495 = vld [vmem:[%s1] sm:$0xff]
      %v496 = vld [vmem:[%s489] sm:$0xff]
      %v497 = vld [vmem:[%s489 + $0x8] sm:$0xff]
      %v498 = vld [vmem:[%s489 + $0x10] sm:$0xff]
      %v499 = vld [vmem:[%s489 + $0x18] sm:$0xff]
      %v500 = vld [vmem:[%s489 + $0x20] sm:$0xff]
      %v501 = vld [vmem:[%s489 + $0x28] sm:$0xff]
      %v502 = vld [vmem:[%s489 + $0x30] sm:$0x7]
      %v503 = vld [vmem:[%s489 + $0x38] sm:$0x7]
      %v504 = vld [vmem:[%s2] sm:$0xff]
      %506 = vset.pattern.permute.xlu0 0
      %507 = vperm.xlu0 %506, %v504
      %v508 = vpop.permute.xlu0 %507
      %vm510 = vcmask 220160
      %v512 = vsel %vm510, %v495, 0
      %vm514 = vcmask 1042432
      %v516 = vsel %vm514, %v502, 0
      %v519 = vsel %vm514, %v503, 0
      %521 = vmatprep.subr.mxu0 %v497
      %522 = vmatpush1.msra.mxu0 %v496
      %523 = vmatprep.subr.mxu0 %v499
      %524 = vmatpush1.msra.mxu0 %v498
      %525 = vmatprep.subr.mxu0 %v501
      %526 = vmatpush1.msra.mxu0 %v500
      %527 = vmatprep.subr.mxu0 %v519
      %528 = vmatpush1.msra.mxu0 %v516
      %529 = vmatprep.subr.mxu0 0.0
      %530 = vmatpush1.msra.mxu0 0.0
      %531 = vmatprep.subr.mxu0 0.0
      %532 = vmatpush1.msra.mxu0 0.0
      %533 = vmatprep.subr.mxu0 0.0
      %534 = vmatpush1.msra.mxu0 0.0
      %535 = vmatprep.subr.mxu0 0.0
      %536 = vmatpush1.msra.mxu0 0.0
      %537 = vmatprep.subr.mxu0 0.0
      %538 = vmatpush1.msra.mxu0 0.0
      %539 = vmatprep.subr.mxu0 0.0
      %540 = vmatpush1.msra.mxu0 0.0
      %541 = vmatprep.subr.mxu0 0.0
      %542 = vmatpush1.msra.mxu0 0.0
      %543 = vmatprep.subr.mxu0 0.0
      %544 = vmatpush1.msra.mxu0 0.0
      %545 = vmatprep.subr.mxu0 0.0
      %546 = vmatpush1.msra.mxu0 0.0
      %547 = vmatprep.subr.mxu0 0.0
      %548 = vmatpush1.msra.mxu0 0.0
      %549 = vmatprep.subr.mxu0 0.0
      %550 = vmatpush1.msra.mxu0 0.0
      %551 = vmatprep.subr.mxu0 0.0
      %552 = vmatpush1.msra.mxu0 0.0
      %553 = vmatprep.subr.mxu0 0.0
      %554 = vmatpush1.msra.mxu0 0.0
      %555 = vmatprep.subr.mxu0 0.0
      %556 = vmatpush1.msra.mxu0 0.0
      %557 = vmatprep.subr.mxu0 0.0
      %558 = vmatpush1.msra.mxu0 0.0
      %559 = vmatprep.subr.mxu0 0.0
      %560 = vmatpush1.msra.mxu0 0.0
      %561 = vmatprep.subr.mxu0 0.0
      %562 = vmatpush1.msra.mxu0 0.0
      %563 = vmatprep.subr.mxu0 0.0
      %564 = vmatpush1.msra.mxu0 0.0
      %565 = vmatprep.subr.mxu0 0.0
      %566 = vmatpush1.msra.mxu0 0.0
      %567 = vmatprep.subr.mxu0 0.0
      %568 = vmatpush1.msra.mxu0 0.0
      %569 = vmatprep.subr.mxu0 0.0
      %570 = vmatpush1.msra.mxu0 0.0
      %571 = vmatprep.subr.mxu0 0.0
      %572 = vmatpush1.msra.mxu0 0.0
      %573 = vmatprep.subr.mxu0 0.0
      %574 = vmatpush1.msra.mxu0 0.0
      %575 = vmatprep.subr.mxu0 0.0
      %576 = vmatpush1.msra.mxu0 0.0
      %577 = vmatprep.subr.mxu0 0.0
      %578 = vmatpush1.msra.mxu0 0.0
      %579 = vmatprep.subr.mxu0 0.0
      %580 = vmatpush1.msra.mxu0 0.0
      %581 = vmatprep.subr.mxu0 0.0
      %582 = vmatpush1.msra.mxu0 0.0
      %583 = vmatprep.subr.mxu0 0.0
      %584 = vmatpush1.msra.mxu0 0.0
      %585 = vmatprep.mubr.f32.mxu0 0.0
      %586 = vmatmul.mubr.f32.gmra.mrb[0].mxu0 %v512
      %v587 = vpop.f32.mrb[0].mxu0
      %v588 = vadd.f32 %v508, %v587
      %v589 = vpop.f32.mrb[0].mxu0
      %v590 = vadd.f32 %v508, %v589
      %591 = vdwg.mxu0
      %v592 = vmax.f32 %v588, 0.0
      %v593 = vmax.f32 %v590, 0.0
      %v594 = vld [vmem:[%s11] sm:$0xff]
      %v595 = vld [vmem:[%s11 + $0x8] sm:$0xff]
      %v596 = vld [vmem:[%s11 + $0x10] sm:$0xff]
      %v597 = vld [vmem:[%s11 + $0x18] sm:$0xff]
      %v598 = vld [vmem:[%s11 + $0x20] sm:$0xff]
      %v599 = vld [vmem:[%s11 + $0x28] sm:$0xff]
      %v600 = vld [vmem:[%s11 + $0x30] sm:$0xff]
      %v601 = vld [vmem:[%s11 + $0x38] sm:$0xff]
      %v602 = vld [vmem:[%s11 + $0x40] sm:$0xff]
      %v603 = vld [vmem:[%s11 + $0x48] sm:$0xff]
      %v604 = vld [vmem:[%s11 + $0x50] sm:$0xff]
      %v605 = vld [vmem:[%s11 + $0x58] sm:$0xff]
      %v606 = vld [vmem:[%s11 + $0x60] sm:$0xff]
      %v607 = vld [vmem:[%s11 + $0x68] sm:$0xff]
      %v608 = vld [vmem:[%s11 + $0x70] sm:$0xff]
      %v609 = vld [vmem:[%s11 + $0x78] sm:$0xff]
      %v610 = vld [vmem:[%s11 + $0x80] sm:$0xff]
      %v611 = vld [vmem:[%s11 + $0x88] sm:$0xff]
      %v612 = vld [vmem:[%s11 + $0x90] sm:$0xff]
      %v613 = vld [vmem:[%s11 + $0x98] sm:$0xff]
      %v614 = vld [vmem:[%s11 + $0xa0] sm:$0xff]
      %v615 = vld [vmem:[%s11 + $0xa8] sm:$0xff]
      %v616 = vld [vmem:[%s11 + $0xb0] sm:$0xff]
      %v617 = vld [vmem:[%s11 + $0xb8] sm:$0xff]
      %v618 = vld [vmem:[%s11 + $0xc0] sm:$0xff]
      %v619 = vld [vmem:[%s11 + $0xc8] sm:$0xff]
      %v620 = vld [vmem:[%s11 + $0xd0] sm:$0xff]
      %v621 = vld [vmem:[%s11 + $0xd8] sm:$0xff]
      %v622 = vld [vmem:[%s11 + $0xe0] sm:$0xff]
      %v623 = vld [vmem:[%s11 + $0xe8] sm:$0xff]
      %v624 = vld [vmem:[%s11 + $0xf0] sm:$0xff]
      %v625 = vld [vmem:[%s11 + $0xf8] sm:$0xff]
      %626 = vmatprep.subr.mxu0 0.0
      %627 = vmatpush1.msra.mxu0 %v594
      %628 = vmatprep.subr.mxu0 0.0
      %629 = vmatpush1.msra.mxu0 %v595
      %630 = vmatprep.subr.mxu0 0.0
      %631 = vmatpush1.msra.mxu0 %v596
      %632 = vmatprep.subr.mxu0 0.0
      %633 = vmatpush1.msra.mxu0 %v597
      %634 = vmatprep.subr.mxu0 0.0
      %635 = vmatpush1.msra.mxu0 %v598
      %636 = vmatprep.subr.mxu0 0.0
      %637 = vmatpush1.msra.mxu0 %v599
      %638 = vmatprep.subr.mxu0 0.0
      %639 = vmatpush1.msra.mxu0 %v600
      %640 = vmatprep.subr.mxu0 0.0
      %641 = vmatpush1.msra.mxu0 %v601
      %642 = vmatprep.subr.mxu0 0.0
      %643 = vmatpush1.msra.mxu0 %v602
      %644 = vmatprep.subr.mxu0 0.0
      %645 = vmatpush1.msra.mxu0 %v603
      %646 = vmatprep.subr.mxu0 0.0
      %647 = vmatpush1.msra.mxu0 %v604
      %648 = vmatprep.subr.mxu0 0.0
      %649 = vmatpush1.msra.mxu0 %v605
      %650 = vmatprep.subr.mxu0 0.0
      %651 = vmatpush1.msra.mxu0 %v606
      %652 = vmatprep.subr.mxu0 0.0
      %653 = vmatpush1.msra.mxu0 %v607
      %654 = vmatprep.subr.mxu0 0.0
      %655 = vmatpush1.msra.mxu0 %v608
      %656 = vmatprep.subr.mxu0 0.0
      %657 = vmatpush1.msra.mxu0 %v609
      %658 = vmatprep.subr.mxu0 0.0
      %659 = vmatpush1.msra.mxu0 %v610
      %660 = vmatprep.subr.mxu0 0.0
      %661 = vmatpush1.msra.mxu0 %v611
      %662 = vmatprep.subr.mxu0 0.0
      %663 = vmatpush1.msra.mxu0 %v612
      %664 = vmatprep.subr.mxu0 0.0
      %665 = vmatpush1.msra.mxu0 %v613
      %666 = vmatprep.subr.mxu0 0.0
      %667 = vmatpush1.msra.mxu0 %v614
      %668 = vmatprep.subr.mxu0 0.0
      %669 = vmatpush1.msra.mxu0 %v615
      %670 = vmatprep.subr.mxu0 0.0
      %671 = vmatpush1.msra.mxu0 %v616
      %672 = vmatprep.subr.mxu0 0.0
      %673 = vmatpush1.msra.mxu0 %v617
      %674 = vmatprep.subr.mxu0 0.0
      %675 = vmatpush1.msra.mxu0 %v618
      %676 = vmatprep.subr.mxu0 0.0
      %677 = vmatpush1.msra.mxu0 %v619
      %678 = vmatprep.subr.mxu0 0.0
      %679 = vmatpush1.msra.mxu0 %v620
      %680 = vmatprep.subr.mxu0 0.0
      %681 = vmatpush1.msra.mxu0 %v621
      %682 = vmatprep.subr.mxu0 0.0
      %683 = vmatpush1.msra.mxu0 %v622
      %684 = vmatprep.subr.mxu0 0.0
      %685 = vmatpush1.msra.mxu0 %v623
      %686 = vmatprep.subr.mxu0 0.0
      %687 = vmatpush1.msra.mxu0 %v624
      %688 = vmatprep.subr.mxu0 0.0
      %689 = vmatpush1.msra.mxu0 %v625
      %690 = vmatprep.mubr.f32.mxu0 %v593
      %691 = vmatmul.mubr.f32.gmra.mrb[0].mxu0 %v592
      %v692 = vpop.f32.mrb[0].mxu0
      %v693 = vadd.f32 0.0, %v692
      %v694 = vpop.f32.mrb[0].mxu0
      %695 = vdwg.mxu0
      %v696 = vld [vmem:[%s3] sm:$0xff]
      %v697 = vld [vmem:[%s3 + $0x8] sm:$0xff]
      %v698 = vld [vmem:[%s3 + $0x10] sm:$0xff]
      %v699 = vld [vmem:[%s3 + $0x18] sm:$0xff]
      %vm700 = vcmask 64512
      %v702 = vsel %vm700, %v696, 0
      %v705 = vsel %vm700, %v697, 0
      %v708 = vsel %vm700, %v698, 0
      %v711 = vsel %vm700, %v699, 0
      %713 = vmatprep.subr.mxu0 0.0
      %714 = vmatpush1.msra.mxu0 %v693
      %715 = vmatprep.subr.mxu0 0.0
      %716 = vmatpush1.msra.mxu0 0.0
      %717 = vmatprep.subr.mxu0 0.0
      %718 = vmatpush1.msra.mxu0 0.0
      %719 = vmatprep.subr.mxu0 0.0
      %720 = vmatpush1.msra.mxu0 0.0
      %721 = vmatprep.subr.mxu0 0.0
      %722 = vmatpush1.msra.mxu0 0.0
      %723 = vmatprep.subr.mxu0 0.0
      %724 = vmatpush1.msra.mxu0 0.0
      %725 = vmatprep.subr.mxu0 0.0
      %726 = vmatpush1.msra.mxu0 0.0
      %727 = vmatprep.subr.mxu0 0.0
      %728 = vmatpush1.msra.mxu0 0.0
      %729 = vmatprep.subr.mxu0 0.0
      %730 = vmatpush1.msra.mxu0 0.0
      %731 = vmatprep.subr.mxu0 0.0
      %732 = vmatpush1.msra.mxu0 0.0
      %733 = vmatprep.subr.mxu0 0.0
      %734 = vmatpush1.msra.mxu0 0.0
      %735 = vmatprep.subr.mxu0 0.0
      %736 = vmatpush1.msra.mxu0 0.0
      %737 = vmatprep.subr.mxu0 0.0
      %738 = vmatpush1.msra.mxu0 0.0
      %739 = vmatprep.subr.mxu0 0.0
      %740 = vmatpush1.msra.mxu0 0.0
      %741 = vmatprep.subr.mxu0 0.0
      %742 = vmatpush1.msra.mxu0 0.0
      %743 = vmatprep.subr.mxu0 0.0
      %744 = vmatpush1.msra.mxu0 0.0
      %745 = vmatprep.subr.mxu0 0.0
      %746 = vmatpush1.msra.mxu0 0.0
      %747 = vmatprep.subr.mxu0 0.0
      %748 = vmatpush1.msra.mxu0 0.0
      %749 = vmatprep.subr.mxu0 0.0
      %750 = vmatpush1.msra.mxu0 0.0
      %751 = vmatprep.subr.mxu0 0.0
      %752 = vmatpush1.msra.mxu0 0.0
      %753 = vmatprep.subr.mxu0 0.0
      %754 = vmatpush1.msra.mxu0 0.0
      %755 = vmatprep.subr.mxu0 0.0
      %756 = vmatpush1.msra.mxu0 0.0
      %757 = vmatprep.subr.mxu0 0.0
      %758 = vmatpush1.msra.mxu0 0.0
      %759 = vmatprep.subr.mxu0 0.0
      %760 = vmatpush1.msra.mxu0 0.0
      %761 = vmatprep.subr.mxu0 0.0
      %762 = vmatpush1.msra.mxu0 0.0
      %763 = vmatprep.subr.mxu0 0.0
      %764 = vmatpush1.msra.mxu0 0.0
      %765 = vmatprep.subr.mxu0 0.0
      %766 = vmatpush1.msra.mxu0 0.0
      %767 = vmatprep.subr.mxu0 0.0
      %768 = vmatpush1.msra.mxu0 0.0
      %769 = vmatprep.subr.mxu0 0.0
      %770 = vmatpush1.msra.mxu0 0.0
      %771 = vmatprep.subr.mxu0 0.0
      %772 = vmatpush1.msra.mxu0 0.0
      %773 = vmatprep.subr.mxu0 0.0
      %774 = vmatpush1.msra.mxu0 0.0
      %775 = vmatprep.subr.mxu0 0.0
      %776 = vmatpush1.msra.mxu0 0.0
      %777 = vmatprep.mubr.f32.mxu0 0.0
      %778 = vmatmul.mubr.f32.gmra.mrb[0].mxu0 %v702
      %v779 = vpop.f32.mrb[0].mxu0
      %v780 = vadd.f32 0.0, %v779
      %v781 = vpop.f32.mrb[0].mxu0
      %782 = vmatprep.mubr.f32.mxu0 0.0
      %783 = vmatmul.mubr.f32.gmra.mrb[0].mxu0 %v705
      %v784 = vpop.f32.mrb[0].mxu0
      %v785 = vadd.f32 0.0, %v784
      %v786 = vpop.f32.mrb[0].mxu0
      %787 = vmatprep.mubr.f32.mxu0 0.0
      %788 = vmatmul.mubr.f32.gmra.mrb[0].mxu0 %v708
      %v789 = vpop.f32.mrb[0].mxu0
      %v790 = vadd.f32 0.0, %v789
      %v791 = vpop.f32.mrb[0].mxu0
      %792 = vmatprep.mubr.f32.mxu0 0.0
      %793 = vmatmul.mubr.f32.gmra.mrb[0].mxu0 %v711
      %v794 = vpop.f32.mrb[0].mxu0
      %v795 = vadd.f32 0.0, %v794
      %v796 = vpop.f32.mrb[0].mxu0
      %797 = vdwg.mxu0
      %v798 = vld [vmem:[%s4] sm:$0xff]
      %v799 = vld [vmem:[%s4 + $0x8] sm:$0xff]
      %v800 = vld [vmem:[%s4 + $0x10] sm:$0xff]
      %v801 = vld [vmem:[%s4 + $0x18] sm:$0xff]
      %v802 = vld [vmem:[%s12] sm:$0xff]
      %v803 = vld [vmem:[%s12 + $0x8] sm:$0xff]
      %v804 = vld [vmem:[%s12 + $0x10] sm:$0xff]
      %v805 = vld [vmem:[%s12 + $0x18] sm:$0xff]
      %v806 = vld [vmem:[%s12 + $0x20] sm:$0xff]
      %v807 = vld [vmem:[%s12 + $0x28] sm:$0xff]
      %v808 = vld [vmem:[%s12 + $0x30] sm:$0xff]
      %v809 = vld [vmem:[%s12 + $0x38] sm:$0xff]
      %vm810 = vcmask 523264
      %v812 = vsel %vm810, %v790, 0
      %v815 = vsel %vm810, %v795, 0
      %817 = vmatprep.subr.mxu0 0.0
      %818 = vmatpush1.msra.mxu0 %v802
      %819 = vmatprep.subr.mxu0 0.0
      %820 = vmatpush1.msra.mxu0 %v803
      %821 = vmatprep.subr.mxu0 0.0
      %822 = vmatpush1.msra.mxu0 %v804
      %823 = vmatprep.subr.mxu0 0.0
      %824 = vmatpush1.msra.mxu0 %v805
      %825 = vmatprep.subr.mxu0 0.0
      %826 = vmatpush1.msra.mxu0 %v806
      %827 = vmatprep.subr.mxu0 0.0
      %828 = vmatpush1.msra.mxu0 %v807
      %829 = vmatprep.subr.mxu0 0.0
      %830 = vmatpush1.msra.mxu0 %v808
      %831 = vmatprep.subr.mxu0 0.0
      %832 = vmatpush1.msra.mxu0 %v809
      %833 = vmatprep.subr.mxu0 0.0
      %834 = vmatpush1.msra.mxu0 0.0
      %835 = vmatprep.subr.mxu0 0.0
      %836 = vmatpush1.msra.mxu0 0.0
      %837 = vmatprep.subr.mxu0 0.0
      %838 = vmatpush1.msra.mxu0 0.0
      %839 = vmatprep.subr.mxu0 0.0
      %840 = vmatpush1.msra.mxu0 0.0
      %841 = vmatprep.subr.mxu0 0.0
      %842 = vmatpush1.msra.mxu0 0.0
      %843 = vmatprep.subr.mxu0 0.0
      %844 = vmatpush1.msra.mxu0 0.0
      %845 = vmatprep.subr.mxu0 0.0
      %846 = vmatpush1.msra.mxu0 0.0
      %847 = vmatprep.subr.mxu0 0.0
      %848 = vmatpush1.msra.mxu0 0.0
      %849 = vmatprep.subr.mxu0 0.0
      %850 = vmatpush1.msra.mxu0 0.0
      %851 = vmatprep.subr.mxu0 0.0
      %852 = vmatpush1.msra.mxu0 0.0
      %853 = vmatprep.subr.mxu0 0.0
      %854 = vmatpush1.msra.mxu0 0.0
      %855 = vmatprep.subr.mxu0 0.0
      %856 = vmatpush1.msra.mxu0 0.0
      %857 = vmatprep.subr.mxu0 0.0
      %858 = vmatpush1.msra.mxu0 0.0
      %859 = vmatprep.subr.mxu0 0.0
      %860 = vmatpush1.msra.mxu0 0.0
      %861 = vmatprep.subr.mxu0 0.0
      %862 = vmatpush1.msra.mxu0 0.0
      %863 = vmatprep.subr.mxu0 0.0
      %864 = vmatpush1.msra.mxu0 0.0
      %865 = vmatprep.subr.mxu0 0.0
      %866 = vmatpush1.msra.mxu0 0.0
      %867 = vmatprep.subr.mxu0 0.0
      %868 = vmatpush1.msra.mxu0 0.0
      %869 = vmatprep.subr.mxu0 0.0
      %870 = vmatpush1.msra.mxu0 0.0
      %871 = vmatprep.subr.mxu0 0.0
      %872 = vmatpush1.msra.mxu0 0.0
      %873 = vmatprep.subr.mxu0 0.0
      %874 = vmatpush1.msra.mxu0 0.0
      %875 = vmatprep.subr.mxu0 0.0
      %876 = vmatpush1.msra.mxu0 0.0
      %877 = vmatprep.subr.mxu0 0.0
      %878 = vmatpush1.msra.mxu0 0.0
      %879 = vmatprep.subr.mxu0 0.0
      %880 = vmatpush1.msra.mxu0 0.0
      %881 = vmatprep.mubr.f32.mxu0 0.0
      %882 = vmatmul.mubr.f32.gmra.mrb[0].mxu0 %v812
      %v883 = vpop.f32.mrb[0].mxu0
      %v884 = vadd.f32 0.0, %v883
      %v885 = vpop.f32.mrb[0].mxu0
      %886 = vmatprep.mubr.f32.mxu0 0.0
      %887 = vmatmul.mubr.f32.gmra.mrb[0].mxu0 %v815
      %v888 = vpop.f32.mrb[0].mxu0
      %v889 = vadd.f32 0.0, %v888
      %v890 = vpop.f32.mrb[0].mxu0
      %891 = vdwg.mxu0
      %vm892 = vcmask 130048
      %v894 = vsel %vm892, %v798, 0
      %v897 = vsel %vm892, %v799, 0
      %v900 = vsel %vm892, %v800, 0
      %v903 = vsel %vm892, %v801, 0
      %905 = vmatprep.subr.mxu0 0.0
      %906 = vmatpush1.msra.mxu0 %v884
      %907 = vmatprep.subr.mxu0 0.0
      %908 = vmatpush1.msra.mxu0 %v889
      %909 = vmatprep.subr.mxu0 0.0
      %910 = vmatpush1.msra.mxu0 0.0
      %911 = vmatprep.subr.mxu0 0.0
      %912 = vmatpush1.msra.mxu0 0.0
      %913 = vmatprep.subr.mxu0 0.0
      %914 = vmatpush1.msra.mxu0 0.0
      %915 = vmatprep.subr.mxu0 0.0
      %916 = vmatpush1.msra.mxu0 0.0
      %917 = vmatprep.subr.mxu0 0.0
      %918 = vmatpush1.msra.mxu0 0.0
      %919 = vmatprep.subr.mxu0 0.0
      %920 = vmatpush1.msra.mxu0 0.0
      %921 = vmatprep.subr.mxu0 0.0
      %922 = vmatpush1.msra.mxu0 0.0
      %923 = vmatprep.subr.mxu0 0.0
      %924 = vmatpush1.msra.mxu0 0.0
      %925 = vmatprep.subr.mxu0 0.0
      %926 = vmatpush1.msra.mxu0 0.0
      %927 = vmatprep.subr.mxu0 0.0
      %928 = vmatpush1.msra.mxu0 0.0
      %929 = vmatprep.subr.mxu0 0.0
      %930 = vmatpush1.msra.mxu0 0.0
      %931 = vmatprep.subr.mxu0 0.0
      %932 = vmatpush1.msra.mxu0 0.0
      %933 = vmatprep.subr.mxu0 0.0
      %934 = vmatpush1.msra.mxu0 0.0
      %935 = vmatprep.subr.mxu0 0.0
      %936 = vmatpush1.msra.mxu0 0.0
      %937 = vmatprep.subr.mxu0 0.0
      %938 = vmatpush1.msra.mxu0 0.0
      %939 = vmatprep.subr.mxu0 0.0
      %940 = vmatpush1.msra.mxu0 0.0
      %941 = vmatprep.subr.mxu0 0.0
      %942 = vmatpush1.msra.mxu0 0.0
      %943 = vmatprep.subr.mxu0 0.0
      %944 = vmatpush1.msra.mxu0 0.0
      %945 = vmatprep.subr.mxu0 0.0
      %946 = vmatpush1.msra.mxu0 0.0
      %947 = vmatprep.subr.mxu0 0.0
      %948 = vmatpush1.msra.mxu0 0.0
      %949 = vmatprep.subr.mxu0 0.0
      %950 = vmatpush1.msra.mxu0 0.0
      %951 = vmatprep.subr.mxu0 0.0
      %952 = vmatpush1.msra.mxu0 0.0
      %953 = vmatprep.subr.mxu0 0.0
      %954 = vmatpush1.msra.mxu0 0.0
      %955 = vmatprep.subr.mxu0 0.0
      %956 = vmatpush1.msra.mxu0 0.0
      %957 = vmatprep.subr.mxu0 0.0
      %958 = vmatpush1.msra.mxu0 0.0
      %959 = vmatprep.subr.mxu0 0.0
      %960 = vmatpush1.msra.mxu0 0.0
      %961 = vmatprep.subr.mxu0 0.0
      %962 = vmatpush1.msra.mxu0 0.0
      %963 = vmatprep.subr.mxu0 0.0
      %964 = vmatpush1.msra.mxu0 0.0
      %965 = vmatprep.subr.mxu0 0.0
      %966 = vmatpush1.msra.mxu0 0.0
      %967 = vmatprep.subr.mxu0 0.0
      %968 = vmatpush1.msra.mxu0 0.0
      %969 = vmatprep.mubr.f32.mxu0 0.0
      %970 = vmatmul.mubr.f32.gmra.mrb[0].mxu0 %v894
      %v971 = vpop.f32.mrb[0].mxu0
      %v972 = vadd.f32 0.0, %v971
      %v973 = vpop.f32.mrb[0].mxu0
      %974 = vmatprep.mubr.f32.mxu0 0.0
      %975 = vmatmul.mubr.f32.gmra.mrb[0].mxu0 %v897
      %v976 = vpop.f32.mrb[0].mxu0
      %v977 = vadd.f32 0.0, %v976
      %v978 = vpop.f32.mrb[0].mxu0
      %979 = vmatprep.mubr.f32.mxu0 0.0
      %980 = vmatmul.mubr.f32.gmra.mrb[0].mxu0 %v900
      %v981 = vpop.f32.mrb[0].mxu0
      %v982 = vadd.f32 0.0, %v981
      %v983 = vpop.f32.mrb[0].mxu0
      %984 = vmatprep.mubr.f32.mxu0 0.0
      %985 = vmatmul.mubr.f32.gmra.mrb[0].mxu0 %v903
      %v986 = vpop.f32.mrb[0].mxu0
      %v987 = vadd.f32 0.0, %v986
      %v988 = vpop.f32.mrb[0].mxu0
      %989 = vdwg.mxu0
      %v990 = vld [vmem:[%s5] sm:$0xff]
      %v991 = vld [vmem:[%s5 + $0x8] sm:$0xff]
      %vm992 = vcmask 261120
      %v994 = vsel %vm992, %v990, 0
      %v997 = vsel %vm992, %v991, 0
      %999 = vmatprep.subr.mxu0 0.0
      %1000 = vmatpush1.msra.mxu0 %v972
      %1001 = vmatprep.subr.mxu0 0.0
      %1002 = vmatpush1.msra.mxu0 %v977
      %1003 = vmatprep.subr.mxu0 0.0
      %1004 = vmatpush1.msra.mxu0 %v982
      %1005 = vmatprep.subr.mxu0 0.0
      %1006 = vmatpush1.msra.mxu0 %v987
      %1007 = vmatprep.subr.mxu0 0.0
      %1008 = vmatpush1.msra.mxu0 0.0
      %1009 = vmatprep.subr.mxu0 0.0
      %1010 = vmatpush1.msra.mxu0 0.0
      %1011 = vmatprep.subr.mxu0 0.0
      %1012 = vmatpush1.msra.mxu0 0.0
      %1013 = vmatprep.subr.mxu0 0.0
      %1014 = vmatpush1.msra.mxu0 0.0
      %1015 = vmatprep.subr.mxu0 0.0
      %1016 = vmatpush1.msra.mxu0 0.0
      %1017 = vmatprep.subr.mxu0 0.0
      %1018 = vmatpush1.msra.mxu0 0.0
      %1019 = vmatprep.subr.mxu0 0.0
      %1020 = vmatpush1.msra.mxu0 0.0
      %1021 = vmatprep.subr.mxu0 0.0
      %1022 = vmatpush1.msra.mxu0 0.0
      %1023 = vmatprep.subr.mxu0 0.0
      %1024 = vmatpush1.msra.mxu0 0.0
      %1025 = vmatprep.subr.mxu0 0.0
      %1026 = vmatpush1.msra.mxu0 0.0
      %1027 = vmatprep.subr.mxu0 0.0
      %1028 = vmatpush1.msra.mxu0 0.0
      %1029 = vmatprep.subr.mxu0 0.0
      %1030 = vmatpush1.msra.mxu0 0.0
      %1031 = vmatprep.subr.mxu0 0.0
      %1032 = vmatpush1.msra.mxu0 0.0
      %1033 = vmatprep.subr.mxu0 0.0
      %1034 = vmatpush1.msra.mxu0 0.0
      %1035 = vmatprep.subr.mxu0 0.0
      %1036 = vmatpush1.msra.mxu0 0.0
      %1037 = vmatprep.subr.mxu0 0.0
      %1038 = vmatpush1.msra.mxu0 0.0
      %1039 = vmatprep.subr.mxu0 0.0
      %1040 = vmatpush1.msra.mxu0 0.0
      %1041 = vmatprep.subr.mxu0 0.0
      %1042 = vmatpush1.msra.mxu0 0.0
      %1043 = vmatprep.subr.mxu0 0.0
      %1044 = vmatpush1.msra.mxu0 0.0
      %1045 = vmatprep.subr.mxu0 0.0
      %1046 = vmatpush1.msra.mxu0 0.0
      %1047 = vmatprep.subr.mxu0 0.0
      %1048 = vmatpush1.msra.mxu0 0.0
      %1049 = vmatprep.subr.mxu0 0.0
      %1050 = vmatpush1.msra.mxu0 0.0
      %1051 = vmatprep.subr.mxu0 0.0
      %1052 = vmatpush1.msra.mxu0 0.0
      %1053 = vmatprep.subr.mxu0 0.0
      %1054 = vmatpush1.msra.mxu0 0.0
      %1055 = vmatprep.subr.mxu0 0.0
      %1056 = vmatpush1.msra.mxu0 0.0
      %1057 = vmatprep.subr.mxu0 0.0
      %1058 = vmatpush1.msra.mxu0 0.0
      %1059 = vmatprep.subr.mxu0 0.0
      %1060 = vmatpush1.msra.mxu0 0.0
      %1061 = vmatprep.subr.mxu0 0.0
      %1062 = vmatpush1.msra.mxu0 0.0
      %1063 = vmatprep.mubr.f32.mxu0 0.0
      %1064 = vmatmul.mubr.f32.gmra.mrb[0].mxu0 %v994
      %v1065 = vpop.f32.mrb[0].mxu0
      %v1066 = vadd.f32 0.0, %v1065
      %v1067 = vpop.f32.mrb[0].mxu0
      %1068 = vmatprep.mubr.f32.mxu0 0.0
      %1069 = vmatmul.mubr.f32.gmra.mrb[0].mxu0 %v997
      %v1070 = vpop.f32.mrb[0].mxu0
      %v1071 = vadd.f32 0.0, %v1070
      %v1072 = vpop.f32.mrb[0].mxu0
      %1073 = vdwg.mxu0
      %v1074 = vld [vmem:[%s13] sm:$0xff]
      %v1075 = vld [vmem:[%s13 + $0x8] sm:$0xff]
      %v1077 = vsel %vm892, %v1066, 0
      %v1080 = vsel %vm892, %v1071, 0
      %1082 = vmatprep.subr.mxu0 0.0
      %1083 = vmatpush1.msra.mxu0 %v1074
      %1084 = vmatprep.subr.mxu0 0.0
      %1085 = vmatpush1.msra.mxu0 %v1075
      %1086 = vmatprep.subr.mxu0 0.0
      %1087 = vmatpush1.msra.mxu0 0.0
      %1088 = vmatprep.subr.mxu0 0.0
      %1089 = vmatpush1.msra.mxu0 0.0
      %1090 = vmatprep.subr.mxu0 0.0
      %1091 = vmatpush1.msra.mxu0 0.0
      %1092 = vmatprep.subr.mxu0 0.0
      %1093 = vmatpush1.msra.mxu0 0.0
      %1094 = vmatprep.subr.mxu0 0.0
      %1095 = vmatpush1.msra.mxu0 0.0
      %1096 = vmatprep.subr.mxu0 0.0
      %1097 = vmatpush1.msra.mxu0 0.0
      %1098 = vmatprep.subr.mxu0 0.0
      %1099 = vmatpush1.msra.mxu0 0.0
      %1100 = vmatprep.subr.mxu0 0.0
      %1101 = vmatpush1.msra.mxu0 0.0
      %1102 = vmatprep.subr.mxu0 0.0
      %1103 = vmatpush1.msra.mxu0 0.0
      %1104 = vmatprep.subr.mxu0 0.0
      %1105 = vmatpush1.msra.mxu0 0.0
      %1106 = vmatprep.subr.mxu0 0.0
      %1107 = vmatpush1.msra.mxu0 0.0
      %1108 = vmatprep.subr.mxu0 0.0
      %1109 = vmatpush1.msra.mxu0 0.0
      %1110 = vmatprep.subr.mxu0 0.0
      %1111 = vmatpush1.msra.mxu0 0.0
      %1112 = vmatprep.subr.mxu0 0.0
      %1113 = vmatpush1.msra.mxu0 0.0
      %1114 = vmatprep.subr.mxu0 0.0
      %1115 = vmatpush1.msra.mxu0 0.0
      %1116 = vmatprep.subr.mxu0 0.0
      %1117 = vmatpush1.msra.mxu0 0.0
      %1118 = vmatprep.subr.mxu0 0.0
      %1119 = vmatpush1.msra.mxu0 0.0
      %1120 = vmatprep.subr.mxu0 0.0
      %1121 = vmatpush1.msra.mxu0 0.0
      %1122 = vmatprep.subr.mxu0 0.0
      %1123 = vmatpush1.msra.mxu0 0.0
      %1124 = vmatprep.subr.mxu0 0.0
      %1125 = vmatpush1.msra.mxu0 0.0
      %1126 = vmatprep.subr.mxu0 0.0
      %1127 = vmatpush1.msra.mxu0 0.0
      %1128 = vmatprep.subr.mxu0 0.0
      %1129 = vmatpush1.msra.mxu0 0.0
      %1130 = vmatprep.subr.mxu0 0.0
      %1131 = vmatpush1.msra.mxu0 0.0
      %1132 = vmatprep.subr.mxu0 0.0
      %1133 = vmatpush1.msra.mxu0 0.0
      %1134 = vmatprep.subr.mxu0 0.0
      %1135 = vmatpush1.msra.mxu0 0.0
      %1136 = vmatprep.subr.mxu0 0.0
      %1137 = vmatpush1.msra.mxu0 0.0
      %1138 = vmatprep.subr.mxu0 0.0
      %1139 = vmatpush1.msra.mxu0 0.0
      %1140 = vmatprep.subr.mxu0 0.0
      %1141 = vmatpush1.msra.mxu0 0.0
      %1142 = vmatprep.subr.mxu0 0.0
      %1143 = vmatpush1.msra.mxu0 0.0
      %1144 = vmatprep.subr.mxu0 0.0
      %1145 = vmatpush1.msra.mxu0 0.0
      %1146 = vmatprep.mubr.f32.mxu0 0.0
      %1147 = vmatmul.mubr.f32.gmra.mrb[0].mxu0 %v1077
      %v1148 = vpop.f32.mrb[0].mxu0
      %v1149 = vadd.f32 0.0, %v1148
      %v1150 = vpop.f32.mrb[0].mxu0
      %1151 = vmatprep.mubr.f32.mxu0 0.0
      %1152 = vmatmul.mubr.f32.gmra.mrb[0].mxu0 %v1080
      %v1153 = vpop.f32.mrb[0].mxu0
      %v1154 = vadd.f32 0.0, %v1153
      %v1155 = vpop.f32.mrb[0].mxu0
      %1156 = vdwg.mxu0
      %v1157 = vld [vmem:[%s7] sm:$0xf]
      %v1158 = vld [vmem:[%s8] sm:$0xff]
      %v1159 = vld [vmem:[%s8 + $0x8] sm:$0xff]
      %v1160 = vld [vmem:[%s8 + $0x10] sm:$0xff]
      %v1161 = vld [vmem:[%s8 + $0x18] sm:$0xff]
      %v1162 = vadd.f32 %v1149, %v780
      %v1163 = vadd.f32 %v1154, %v785
      %v1164 = vsel %vm810, %v1162, 0.0
      %1165 = vadd.xlane.f32.xlu0 %v1164
      %v1166 = vpop.xlane.xlu0 %1165
      %v1167 = vsel %vm810, %v1163, 0.0
      %1168 = vadd.xlane.f32.xlu0 %v1167
      %v1169 = vpop.xlane.xlu0 %1168
      %v1170 = vrcp.pop 64.0
      %v1171 = vmul.f32 %v1166, %v1170
      %v1172 = vmul.f32 %v1169, %v1170
      %v1174 = vsel %vm892, %v1157, 0
      %1176 = vmatprep.subr.mxu0 0.0
      %1177 = vmatpush1.msra.mxu0 %v1171
      %1178 = vmatprep.subr.mxu0 0.0
      %1179 = vmatpush1.msra.mxu0 %v1172
      %1180 = vmatprep.subr.mxu0 0.0
      %1181 = vmatpush1.msra.mxu0 0.0
      %1182 = vmatprep.subr.mxu0 0.0
      %1183 = vmatpush1.msra.mxu0 0.0
      %1184 = vmatprep.subr.mxu0 0.0
      %1185 = vmatpush1.msra.mxu0 0.0
      %1186 = vmatprep.subr.mxu0 0.0
      %1187 = vmatpush1.msra.mxu0 0.0
      %1188 = vmatprep.subr.mxu0 0.0
      %1189 = vmatpush1.msra.mxu0 0.0
      %1190 = vmatprep.subr.mxu0 0.0
      %1191 = vmatpush1.msra.mxu0 0.0
      %1192 = vmatprep.subr.mxu0 0.0
      %1193 = vmatpush1.msra.mxu0 0.0
      %1194 = vmatprep.subr.mxu0 0.0
      %1195 = vmatpush1.msra.mxu0 0.0
      %1196 = vmatprep.subr.mxu0 0.0
      %1197 = vmatpush1.msra.mxu0 0.0
      %1198 = vmatprep.subr.mxu0 0.0
      %1199 = vmatpush1.msra.mxu0 0.0
      %1200 = vmatprep.subr.mxu0 0.0
      %1201 = vmatpush1.msra.mxu0 0.0
      %1202 = vmatprep.subr.mxu0 0.0
      %1203 = vmatpush1.msra.mxu0 0.0
      %1204 = vmatprep.subr.mxu0 0.0
      %1205 = vmatpush1.msra.mxu0 0.0
      %1206 = vmatprep.subr.mxu0 0.0
      %1207 = vmatpush1.msra.mxu0 0.0
      %1208 = vmatprep.subr.mxu0 0.0
      %1209 = vmatpush1.msra.mxu0 0.0
      %1210 = vmatprep.subr.mxu0 0.0
      %1211 = vmatpush1.msra.mxu0 0.0
      %1212 = vmatprep.subr.mxu0 0.0
      %1213 = vmatpush1.msra.mxu0 0.0
      %1214 = vmatprep.subr.mxu0 0.0
      %1215 = vmatpush1.msra.mxu0 0.0
      %1216 = vmatprep.subr.mxu0 0.0
      %1217 = vmatpush1.msra.mxu0 0.0
      %1218 = vmatprep.subr.mxu0 0.0
      %1219 = vmatpush1.msra.mxu0 0.0
      %1220 = vmatprep.subr.mxu0 0.0
      %1221 = vmatpush1.msra.mxu0 0.0
      %1222 = vmatprep.subr.mxu0 0.0
      %1223 = vmatpush1.msra.mxu0 0.0
      %1224 = vmatprep.subr.mxu0 0.0
      %1225 = vmatpush1.msra.mxu0 0.0
      %1226 = vmatprep.subr.mxu0 0.0
      %1227 = vmatpush1.msra.mxu0 0.0
      %1228 = vmatprep.subr.mxu0 0.0
      %1229 = vmatpush1.msra.mxu0 0.0
      %1230 = vmatprep.subr.mxu0 0.0
      %1231 = vmatpush1.msra.mxu0 0.0
      %1232 = vmatprep.subr.mxu0 0.0
      %1233 = vmatpush1.msra.mxu0 0.0
      %1234 = vmatprep.subr.mxu0 0.0
      %1235 = vmatpush1.msra.mxu0 0.0
      %1236 = vmatprep.subr.mxu0 0.0
      %1237 = vmatpush1.msra.mxu0 0.0
      %1238 = vmatprep.subr.mxu0 0.0
      %1239 = vmatpush1.msra.mxu0 0.0
      %1240 = vmatprep.mubr.f32.mxu0 0.0
      %1241 = vmatmul.mubr.f32.gmra.mrb[0].mxu0 %v1174
      %v1242 = vpop.f32.mrb[0].mxu0
      %v1243 = vadd.f32 0.0, %v1242
      %v1244 = vpop.f32.mrb[0].mxu0
      %1245 = vdwg.mxu0
      %vm1246 = vcmp.ge.f32.partialorder %v1243, 0.0
      %v1247 = vmul.f32 %v1243, 0.2
      %v1248 = vsel %vm1246, %v1243, %v1247
      %vm1249 = vcmask 31744
      %v1251 = vsel %vm1249, %v1158, 0
      %v1254 = vsel %vm1249, %v1159, 0
      %v1257 = vsel %vm1249, %v1160, 0
      %v1260 = vsel %vm1249, %v1161, 0
      %vm1262 = vcmask 1043456
      %v1264 = vsel %vm1262, %v1248, 0
      %1266 = vmatprep.subr.mxu0 0.0
      %1267 = vmatpush1.msra.mxu0 %v1264
      %1268 = vmatprep.subr.mxu0 0.0
      %1269 = vmatpush1.msra.mxu0 0.0
      %1270 = vmatprep.subr.mxu0 0.0
      %1271 = vmatpush1.msra.mxu0 0.0
      %1272 = vmatprep.subr.mxu0 0.0
      %1273 = vmatpush1.msra.mxu0 0.0
      %1274 = vmatprep.subr.mxu0 0.0
      %1275 = vmatpush1.msra.mxu0 0.0
      %1276 = vmatprep.subr.mxu0 0.0
      %1277 = vmatpush1.msra.mxu0 0.0
      %1278 = vmatprep.subr.mxu0 0.0
      %1279 = vmatpush1.msra.mxu0 0.0
      %1280 = vmatprep.subr.mxu0 0.0
      %1281 = vmatpush1.msra.mxu0 0.0
      %1282 = vmatprep.subr.mxu0 0.0
      %1283 = vmatpush1.msra.mxu0 0.0
      %1284 = vmatprep.subr.mxu0 0.0
      %1285 = vmatpush1.msra.mxu0 0.0
      %1286 = vmatprep.subr.mxu0 0.0
      %1287 = vmatpush1.msra.mxu0 0.0
      %1288 = vmatprep.subr.mxu0 0.0
      %1289 = vmatpush1.msra.mxu0 0.0
      %1290 = vmatprep.subr.mxu0 0.0
      %1291 = vmatpush1.msra.mxu0 0.0
      %1292 = vmatprep.subr.mxu0 0.0
      %1293 = vmatpush1.msra.mxu0 0.0
      %1294 = vmatprep.subr.mxu0 0.0
      %1295 = vmatpush1.msra.mxu0 0.0
      %1296 = vmatprep.subr.mxu0 0.0
      %1297 = vmatpush1.msra.mxu0 0.0
      %1298 = vmatprep.subr.mxu0 0.0
      %1299 = vmatpush1.msra.mxu0 0.0
      %1300 = vmatprep.subr.mxu0 0.0
      %1301 = vmatpush1.msra.mxu0 0.0
      %1302 = vmatprep.subr.mxu0 0.0
      %1303 = vmatpush1.msra.mxu0 0.0
      %1304 = vmatprep.subr.mxu0 0.0
      %1305 = vmatpush1.msra.mxu0 0.0
      %1306 = vmatprep.subr.mxu0 0.0
      %1307 = vmatpush1.msra.mxu0 0.0
      %1308 = vmatprep.subr.mxu0 0.0
      %1309 = vmatpush1.msra.mxu0 0.0
      %1310 = vmatprep.subr.mxu0 0.0
      %1311 = vmatpush1.msra.mxu0 0.0
      %1312 = vmatprep.subr.mxu0 0.0
      %1313 = vmatpush1.msra.mxu0 0.0
      %1314 = vmatprep.subr.mxu0 0.0
      %1315 = vmatpush1.msra.mxu0 0.0
      %1316 = vmatprep.subr.mxu0 0.0
      %1317 = vmatpush1.msra.mxu0 0.0
      %1318 = vmatprep.subr.mxu0 0.0
      %1319 = vmatpush1.msra.mxu0 0.0
      %1320 = vmatprep.subr.mxu0 0.0
      %1321 = vmatpush1.msra.mxu0 0.0
      %1322 = vmatprep.subr.mxu0 0.0
      %1323 = vmatpush1.msra.mxu0 0.0
      %1324 = vmatprep.subr.mxu0 0.0
      %1325 = vmatpush1.msra.mxu0 0.0
      %1326 = vmatprep.subr.mxu0 0.0
      %1327 = vmatpush1.msra.mxu0 0.0
      %1328 = vmatprep.subr.mxu0 0.0
      %1329 = vmatpush1.msra.mxu0 0.0
      %1330 = vmatprep.mubr.f32.mxu0 0.0
      %1331 = vmatmul.mubr.f32.gmra.mrb[0].mxu0 %v1251
      %v1332 = vpop.f32.mrb[0].mxu0
      %v1333 = vadd.f32 0.0, %v1332
      %v1334 = vpop.f32.mrb[0].mxu0
      %1335 = vmatprep.mubr.f32.mxu0 0.0
      %1336 = vmatmul.mubr.f32.gmra.mrb[0].mxu0 %v1254
      %v1337 = vpop.f32.mrb[0].mxu0
      %v1338 = vadd.f32 0.0, %v1337
      %v1339 = vpop.f32.mrb[0].mxu0
      %1340 = vmatprep.mubr.f32.mxu0 0.0
      %1341 = vmatmul.mubr.f32.gmra.mrb[0].mxu0 %v1257
      %v1342 = vpop.f32.mrb[0].mxu0
      %v1343 = vadd.f32 0.0, %v1342
      %v1344 = vpop.f32.mrb[0].mxu0
      %1345 = vmatprep.mubr.f32.mxu0 0.0
      %1346 = vmatmul.mubr.f32.gmra.mrb[0].mxu0 %v1260
      %v1347 = vpop.f32.mrb[0].mxu0
      %v1348 = vadd.f32 0.0, %v1347
      %v1349 = vpop.f32.mrb[0].mxu0
      %1350 = vdwg.mxu0
      %v1351 = vmax.f32 %v1333, %v1343
      %v1352 = vmax.f32 %v1338, %v1348
      %v1353 = vsub.f32 %v1333, %v1351
      %v1354 = vsub.f32 %v1338, %v1352
      %v1355 = vmul.f32 %v1353, 1.442695
      %v1356 = vpow.pop %v1355
      %v1357 = vmul.f32 %v1354, 1.442695
      %v1358 = vpow.pop %v1357
      %v1359 = vsub.f32 %v1343, %v1351
      %v1360 = vsub.f32 %v1348, %v1352
      %v1361 = vmul.f32 %v1359, 1.442695
      %v1362 = vpow.pop %v1361
      %v1363 = vmul.f32 %v1360, 1.442695
      %v1364 = vpow.pop %v1363
      %v1365 = vadd.f32 %v1356, %v1362
      %v1366 = vadd.f32 %v1358, %v1364
      %v1367 = vrcp.pop %v1365
      %v1368 = vmul.f32 1.0, %v1367
      %v1369 = vrcp.pop %v1366
      %v1370 = vmul.f32 1.0, %v1369
      %v1371 = vmul.f32 %v1356, %v1368
      %v1372 = vmul.f32 %v1358, %v1370
      %1374 = vset.pattern.permute.xlu0 0
      %1375 = vperm.xlu0 %1374, %v1371
      %v1376 = vpop.permute.xlu0 %1375
      %1379 = vset.pattern.permute.xlu0 0
      %1380 = vperm.xlu0 %1379, %v1372
      %v1381 = vpop.permute.xlu0 %1380
      %v1383 = vmul.f32 %v1149, %v1376
      %v1384 = vmul.f32 %v1154, %v1381
      %v1385 = vmul.f32 %v1362, %v1368
      %v1386 = vmul.f32 %v1364, %v1370
      %1388 = vset.pattern.permute.xlu0 0
      %1389 = vperm.xlu0 %1388, %v1385
      %v1390 = vpop.permute.xlu0 %1389
      %1393 = vset.pattern.permute.xlu0 0
      %1394 = vperm.xlu0 %1393, %v1386
      %v1395 = vpop.permute.xlu0 %1394
      %v1397 = vmul.f32 %v780, %v1390
      %v1398 = vmul.f32 %v785, %v1395
      %v1399 = vadd.f32 %v1383, %v1397
      %v1400 = vadd.f32 %v1384, %v1398
      %v1401 = vld [vmem:[%s6] sm:$0xff]
      %v1403 = vsel %vm892, %v1401, 0
      %1405 = vmatprep.subr.mxu0 0.0
      %1406 = vmatpush1.msra.mxu0 %v1399
      %1407 = vmatprep.subr.mxu0 0.0
      %1408 = vmatpush1.msra.mxu0 %v1400
      %1409 = vmatprep.subr.mxu0 0.0
      %1410 = vmatpush1.msra.mxu0 0.0
      %1411 = vmatprep.subr.mxu0 0.0
      %1412 = vmatpush1.msra.mxu0 0.0
      %1413 = vmatprep.subr.mxu0 0.0
      %1414 = vmatpush1.msra.mxu0 0.0
      %1415 = vmatprep.subr.mxu0 0.0
      %1416 = vmatpush1.msra.mxu0 0.0
      %1417 = vmatprep.subr.mxu0 0.0
      %1418 = vmatpush1.msra.mxu0 0.0
      %1419 = vmatprep.subr.mxu0 0.0
      %1420 = vmatpush1.msra.mxu0 0.0
      %1421 = vmatprep.subr.mxu0 0.0
      %1422 = vmatpush1.msra.mxu0 0.0
      %1423 = vmatprep.subr.mxu0 0.0
      %1424 = vmatpush1.msra.mxu0 0.0
      %1425 = vmatprep.subr.mxu0 0.0
      %1426 = vmatpush1.msra.mxu0 0.0
      %1427 = vmatprep.subr.mxu0 0.0
      %1428 = vmatpush1.msra.mxu0 0.0
      %1429 = vmatprep.subr.mxu0 0.0
      %1430 = vmatpush1.msra.mxu0 0.0
      %1431 = vmatprep.subr.mxu0 0.0
      %1432 = vmatpush1.msra.mxu0 0.0
      %1433 = vmatprep.subr.mxu0 0.0
      %1434 = vmatpush1.msra.mxu0 0.0
      %1435 = vmatprep.subr.mxu0 0.0
      %1436 = vmatpush1.msra.mxu0 0.0
      %1437 = vmatprep.subr.mxu0 0.0
      %1438 = vmatpush1.msra.mxu0 0.0
      %1439 = vmatprep.subr.mxu0 0.0
      %1440 = vmatpush1.msra.mxu0 0.0
      %1441 = vmatprep.subr.mxu0 0.0
      %1442 = vmatpush1.msra.mxu0 0.0
      %1443 = vmatprep.subr.mxu0 0.0
      %1444 = vmatpush1.msra.mxu0 0.0
      %1445 = vmatprep.subr.mxu0 0.0
      %1446 = vmatpush1.msra.mxu0 0.0
      %1447 = vmatprep.subr.mxu0 0.0
      %1448 = vmatpush1.msra.mxu0 0.0
      %1449 = vmatprep.subr.mxu0 0.0
      %1450 = vmatpush1.msra.mxu0 0.0
      %1451 = vmatprep.subr.mxu0 0.0
      %1452 = vmatpush1.msra.mxu0 0.0
      %1453 = vmatprep.subr.mxu0 0.0
      %1454 = vmatpush1.msra.mxu0 0.0
      %1455 = vmatprep.subr.mxu0 0.0
      %1456 = vmatpush1.msra.mxu0 0.0
      %1457 = vmatprep.subr.mxu0 0.0
      %1458 = vmatpush1.msra.mxu0 0.0
      %1459 = vmatprep.subr.mxu0 0.0
      %1460 = vmatpush1.msra.mxu0 0.0
      %1461 = vmatprep.subr.mxu0 0.0
      %1462 = vmatpush1.msra.mxu0 0.0
      %1463 = vmatprep.subr.mxu0 0.0
      %1464 = vmatpush1.msra.mxu0 0.0
      %1465 = vmatprep.subr.mxu0 0.0
      %1466 = vmatpush1.msra.mxu0 0.0
      %1467 = vmatprep.subr.mxu0 0.0
      %1468 = vmatpush1.msra.mxu0 0.0
      %1469 = vmatprep.mubr.f32.mxu0 0.0
      %1470 = vmatmul.mubr.f32.gmra.mrb[0].mxu0 %v1403
      %v1471 = vpop.f32.mrb[0].mxu0
      %v1472 = vadd.f32 0.0, %v1471
      %v1473 = vpop.f32.mrb[0].mxu0
      %1474 = vdwg.mxu0
      %v1475 = vld [vmem:[%s14] sm:$0xff]
      %v1476 = vld [vmem:[%s14 + $0x8] sm:$0xff]
      %v1477 = vld [vmem:[%s14 + $0x10] sm:$0xff]
      %v1478 = vld [vmem:[%s14 + $0x18] sm:$0xff]
      %v1479 = vld [vmem:[%s14 + $0x20] sm:$0xff]
      %v1480 = vld [vmem:[%s14 + $0x28] sm:$0xff]
      %v1481 = vld [vmem:[%s14 + $0x30] sm:$0xff]
      %v1482 = vld [vmem:[%s14 + $0x38] sm:$0xff]
      %v1483 = vld [vmem:[%s14 + $0x40] sm:$0xff]
      %v1484 = vld [vmem:[%s14 + $0x48] sm:$0xff]
      %v1485 = vld [vmem:[%s14 + $0x50] sm:$0xff]
      %v1486 = vld [vmem:[%s14 + $0x58] sm:$0xff]
      %v1487 = vld [vmem:[%s14 + $0x60] sm:$0xff]
      %v1488 = vld [vmem:[%s14 + $0x68] sm:$0xff]
      %v1489 = vld [vmem:[%s14 + $0x70] sm:$0xff]
      %v1490 = vld [vmem:[%s14 + $0x78] sm:$0xff]
      %v1492 = vsel %vm810, %v1472, 0
      %1494 = vmatprep.subr.mxu0 %v1476
      %1495 = vmatpush1.msra.mxu0 %v1475
      %1496 = vmatprep.subr.mxu0 %v1478
      %1497 = vmatpush1.msra.mxu0 %v1477
      %1498 = vmatprep.subr.mxu0 %v1480
      %1499 = vmatpush1.msra.mxu0 %v1479
      %1500 = vmatprep.subr.mxu0 %v1482
      %1501 = vmatpush1.msra.mxu0 %v1481
      %1502 = vmatprep.subr.mxu0 %v1484
      %1503 = vmatpush1.msra.mxu0 %v1483
      %1504 = vmatprep.subr.mxu0 %v1486
      %1505 = vmatpush1.msra.mxu0 %v1485
      %1506 = vmatprep.subr.mxu0 %v1488
      %1507 = vmatpush1.msra.mxu0 %v1487
      %1508 = vmatprep.subr.mxu0 %v1490
      %1509 = vmatpush1.msra.mxu0 %v1489
      %1510 = vmatprep.subr.mxu0 0.0
      %1511 = vmatpush1.msra.mxu0 0.0
      %1512 = vmatprep.subr.mxu0 0.0
      %1513 = vmatpush1.msra.mxu0 0.0
      %1514 = vmatprep.subr.mxu0 0.0
      %1515 = vmatpush1.msra.mxu0 0.0
      %1516 = vmatprep.subr.mxu0 0.0
      %1517 = vmatpush1.msra.mxu0 0.0
      %1518 = vmatprep.subr.mxu0 0.0
      %1519 = vmatpush1.msra.mxu0 0.0
      %1520 = vmatprep.subr.mxu0 0.0
      %1521 = vmatpush1.msra.mxu0 0.0
      %1522 = vmatprep.subr.mxu0 0.0
      %1523 = vmatpush1.msra.mxu0 0.0
      %1524 = vmatprep.subr.mxu0 0.0
      %1525 = vmatpush1.msra.mxu0 0.0
      %1526 = vmatprep.subr.mxu0 0.0
      %1527 = vmatpush1.msra.mxu0 0.0
      %1528 = vmatprep.subr.mxu0 0.0
      %1529 = vmatpush1.msra.mxu0 0.0
      %1530 = vmatprep.subr.mxu0 0.0
      %1531 = vmatpush1.msra.mxu0 0.0
      %1532 = vmatprep.subr.mxu0 0.0
      %1533 = vmatpush1.msra.mxu0 0.0
      %1534 = vmatprep.subr.mxu0 0.0
      %1535 = vmatpush1.msra.mxu0 0.0
      %1536 = vmatprep.subr.mxu0 0.0
      %1537 = vmatpush1.msra.mxu0 0.0
      %1538 = vmatprep.subr.mxu0 0.0
      %1539 = vmatpush1.msra.mxu0 0.0
      %1540 = vmatprep.subr.mxu0 0.0
      %1541 = vmatpush1.msra.mxu0 0.0
      %1542 = vmatprep.subr.mxu0 0.0
      %1543 = vmatpush1.msra.mxu0 0.0
      %1544 = vmatprep.subr.mxu0 0.0
      %1545 = vmatpush1.msra.mxu0 0.0
      %1546 = vmatprep.subr.mxu0 0.0
      %1547 = vmatpush1.msra.mxu0 0.0
      %1548 = vmatprep.subr.mxu0 0.0
      %1549 = vmatpush1.msra.mxu0 0.0
      %1550 = vmatprep.subr.mxu0 0.0
      %1551 = vmatpush1.msra.mxu0 0.0
      %1552 = vmatprep.subr.mxu0 0.0
      %1553 = vmatpush1.msra.mxu0 0.0
      %1554 = vmatprep.subr.mxu0 0.0
      %1555 = vmatpush1.msra.mxu0 0.0
      %1556 = vmatprep.subr.mxu0 0.0
      %1557 = vmatpush1.msra.mxu0 0.0
      %1558 = vmatprep.mubr.f32.mxu0 0.0
      %1559 = vmatmul.mubr.f32.gmra.mrb[0].mxu0 %v1492
      %v1560 = vpop.f32.mrb[0].mxu0
      %v1561 = vadd.f32 0.0, %v1560
      %v1562 = vpop.f32.mrb[0].mxu0
      %v1563 = vadd.f32 0.0, %v1562
      %1564 = vdwg.mxu0
      %v1565 = vld [vmem:[%s9] sm:$0xf]
      %v1566 = vld [vmem:[%s10] sm:$0xff]
      %v1567 = vld [vmem:[%s10 + $0x8] sm:$0xff]
      %v1568 = vadd.f32 %v1561, %v592
      %v1569 = vadd.f32 %v1563, %v593
      %v1570 = vadd.f32 %v1568, %v1569
      %1571 = vadd.xlane.f32.xlu0 %v1570
      %v1572 = vpop.xlane.xlu0 %1571
      %v1573 = vrcp.pop 256.0
      %v1574 = vmul.f32 %v1572, %v1573
      %v1576 = vsel %vm700, %v1565, 0
      %1578 = vmatprep.subr.mxu0 0.0
      %1579 = vmatpush1.msra.mxu0 %v1574
      %1580 = vmatprep.subr.mxu0 0.0
      %1581 = vmatpush1.msra.mxu0 0.0
      %1582 = vmatprep.subr.mxu0 0.0
      %1583 = vmatpush1.msra.mxu0 0.0
      %1584 = vmatprep.subr.mxu0 0.0
      %1585 = vmatpush1.msra.mxu0 0.0
      %1586 = vmatprep.subr.mxu0 0.0
      %1587 = vmatpush1.msra.mxu0 0.0
      %1588 = vmatprep.subr.mxu0 0.0
      %1589 = vmatpush1.msra.mxu0 0.0
      %1590 = vmatprep.subr.mxu0 0.0
      %1591 = vmatpush1.msra.mxu0 0.0
      %1592 = vmatprep.subr.mxu0 0.0
      %1593 = vmatpush1.msra.mxu0 0.0
      %1594 = vmatprep.subr.mxu0 0.0
      %1595 = vmatpush1.msra.mxu0 0.0
      %1596 = vmatprep.subr.mxu0 0.0
      %1597 = vmatpush1.msra.mxu0 0.0
      %1598 = vmatprep.subr.mxu0 0.0
      %1599 = vmatpush1.msra.mxu0 0.0
      %1600 = vmatprep.subr.mxu0 0.0
      %1601 = vmatpush1.msra.mxu0 0.0
      %1602 = vmatprep.subr.mxu0 0.0
      %1603 = vmatpush1.msra.mxu0 0.0
      %1604 = vmatprep.subr.mxu0 0.0
      %1605 = vmatpush1.msra.mxu0 0.0
      %1606 = vmatprep.subr.mxu0 0.0
      %1607 = vmatpush1.msra.mxu0 0.0
      %1608 = vmatprep.subr.mxu0 0.0
      %1609 = vmatpush1.msra.mxu0 0.0
      %1610 = vmatprep.subr.mxu0 0.0
      %1611 = vmatpush1.msra.mxu0 0.0
      %1612 = vmatprep.subr.mxu0 0.0
      %1613 = vmatpush1.msra.mxu0 0.0
      %1614 = vmatprep.subr.mxu0 0.0
      %1615 = vmatpush1.msra.mxu0 0.0
      %1616 = vmatprep.subr.mxu0 0.0
      %1617 = vmatpush1.msra.mxu0 0.0
      %1618 = vmatprep.subr.mxu0 0.0
      %1619 = vmatpush1.msra.mxu0 0.0
      %1620 = vmatprep.subr.mxu0 0.0
      %1621 = vmatpush1.msra.mxu0 0.0
      %1622 = vmatprep.subr.mxu0 0.0
      %1623 = vmatpush1.msra.mxu0 0.0
      %1624 = vmatprep.subr.mxu0 0.0
      %1625 = vmatpush1.msra.mxu0 0.0
      %1626 = vmatprep.subr.mxu0 0.0
      %1627 = vmatpush1.msra.mxu0 0.0
      %1628 = vmatprep.subr.mxu0 0.0
      %1629 = vmatpush1.msra.mxu0 0.0
      %1630 = vmatprep.subr.mxu0 0.0
      %1631 = vmatpush1.msra.mxu0 0.0
      %1632 = vmatprep.subr.mxu0 0.0
      %1633 = vmatpush1.msra.mxu0 0.0
      %1634 = vmatprep.subr.mxu0 0.0
      %1635 = vmatpush1.msra.mxu0 0.0
      %1636 = vmatprep.subr.mxu0 0.0
      %1637 = vmatpush1.msra.mxu0 0.0
      %1638 = vmatprep.subr.mxu0 0.0
      %1639 = vmatpush1.msra.mxu0 0.0
      %1640 = vmatprep.subr.mxu0 0.0
      %1641 = vmatpush1.msra.mxu0 0.0
      %1642 = vmatprep.mubr.f32.mxu0 0.0
      %1643 = vmatmul.mubr.f32.gmra.mrb[0].mxu0 %v1576
      %v1644 = vpop.f32.mrb[0].mxu0
      %v1645 = vadd.f32 0.0, %v1644
      %v1646 = vpop.f32.mrb[0].mxu0
      %1647 = vdwg.mxu0
      %vm1648 = vcmp.ge.f32.partialorder %v1645, 0.0
      %v1649 = vmul.f32 %v1645, 0.2
      %v1650 = vsel %vm1648, %v1645, %v1649
      %v1652 = vsel %vm1249, %v1566, 0
      %v1655 = vsel %vm1249, %v1567, 0
      %v1658 = vsel %vm1262, %v1650, 0
      %1660 = vmatprep.subr.mxu0 0.0
      %1661 = vmatpush1.msra.mxu0 %v1658
      %1662 = vmatprep.subr.mxu0 0.0
      %1663 = vmatpush1.msra.mxu0 0.0
      %1664 = vmatprep.subr.mxu0 0.0
      %1665 = vmatpush1.msra.mxu0 0.0
      %1666 = vmatprep.subr.mxu0 0.0
      %1667 = vmatpush1.msra.mxu0 0.0
      %1668 = vmatprep.subr.mxu0 0.0
      %1669 = vmatpush1.msra.mxu0 0.0
      %1670 = vmatprep.subr.mxu0 0.0
      %1671 = vmatpush1.msra.mxu0 0.0
      %1672 = vmatprep.subr.mxu0 0.0
      %1673 = vmatpush1.msra.mxu0 0.0
      %1674 = vmatprep.subr.mxu0 0.0
      %1675 = vmatpush1.msra.mxu0 0.0
      %1676 = vmatprep.subr.mxu0 0.0
      %1677 = vmatpush1.msra.mxu0 0.0
      %1678 = vmatprep.subr.mxu0 0.0
      %1679 = vmatpush1.msra.mxu0 0.0
      %1680 = vmatprep.subr.mxu0 0.0
      %1681 = vmatpush1.msra.mxu0 0.0
      %1682 = vmatprep.subr.mxu0 0.0
      %1683 = vmatpush1.msra.mxu0 0.0
      %1684 = vmatprep.subr.mxu0 0.0
      %1685 = vmatpush1.msra.mxu0 0.0
      %1686 = vmatprep.subr.mxu0 0.0
      %1687 = vmatpush1.msra.mxu0 0.0
      %1688 = vmatprep.subr.mxu0 0.0
      %1689 = vmatpush1.msra.mxu0 0.0
      %1690 = vmatprep.subr.mxu0 0.0
      %1691 = vmatpush1.msra.mxu0 0.0
      %1692 = vmatprep.subr.mxu0 0.0
      %1693 = vmatpush1.msra.mxu0 0.0
      %1694 = vmatprep.subr.mxu0 0.0
      %1695 = vmatpush1.msra.mxu0 0.0
      %1696 = vmatprep.subr.mxu0 0.0
      %1697 = vmatpush1.msra.mxu0 0.0
      %1698 = vmatprep.subr.mxu0 0.0
      %1699 = vmatpush1.msra.mxu0 0.0
      %1700 = vmatprep.subr.mxu0 0.0
      %1701 = vmatpush1.msra.mxu0 0.0
      %1702 = vmatprep.subr.mxu0 0.0
      %1703 = vmatpush1.msra.mxu0 0.0
      %1704 = vmatprep.subr.mxu0 0.0
      %1705 = vmatpush1.msra.mxu0 0.0
      %1706 = vmatprep.subr.mxu0 0.0
      %1707 = vmatpush1.msra.mxu0 0.0
      %1708 = vmatprep.subr.mxu0 0.0
      %1709 = vmatpush1.msra.mxu0 0.0
      %1710 = vmatprep.subr.mxu0 0.0
      %1711 = vmatpush1.msra.mxu0 0.0
      %1712 = vmatprep.subr.mxu0 0.0
      %1713 = vmatpush1.msra.mxu0 0.0
      %1714 = vmatprep.subr.mxu0 0.0
      %1715 = vmatpush1.msra.mxu0 0.0
      %1716 = vmatprep.subr.mxu0 0.0
      %1717 = vmatpush1.msra.mxu0 0.0
      %1718 = vmatprep.subr.mxu0 0.0
      %1719 = vmatpush1.msra.mxu0 0.0
      %1720 = vmatprep.subr.mxu0 0.0
      %1721 = vmatpush1.msra.mxu0 0.0
      %1722 = vmatprep.subr.mxu0 0.0
      %1723 = vmatpush1.msra.mxu0 0.0
      %1724 = vmatprep.mubr.f32.mxu0 0.0
      %1725 = vmatmul.mubr.f32.gmra.mrb[0].mxu0 %v1652
      %v1726 = vpop.f32.mrb[0].mxu0
      %v1727 = vadd.f32 0.0, %v1726
      %v1728 = vpop.f32.mrb[0].mxu0
      %1729 = vmatprep.mubr.f32.mxu0 0.0
      %1730 = vmatmul.mubr.f32.gmra.mrb[0].mxu0 %v1655
      %v1731 = vpop.f32.mrb[0].mxu0
      %v1732 = vadd.f32 0.0, %v1731
      %v1733 = vpop.f32.mrb[0].mxu0
      %1734 = vdwg.mxu0
      %v1735 = vmax.f32 %v1727, %v1732
      %v1736 = vsub.f32 %v1727, %v1735
      %v1737 = vmul.f32 %v1736, 1.442695
      %v1738 = vpow.pop %v1737
      %v1739 = vsub.f32 %v1732, %v1735
      %v1740 = vmul.f32 %v1739, 1.442695
      %v1741 = vpow.pop %v1740
      %v1742 = vadd.f32 %v1738, %v1741
      %v1743 = vrcp.pop %v1742
      %v1744 = vmul.f32 1.0, %v1743
      %v1745 = vmul.f32 %v1738, %v1744
      %1747 = vset.pattern.permute.xlu0 0
      %1748 = vperm.xlu0 %1747, %v1745
      %v1749 = vpop.permute.xlu0 %1748
      %v1751 = vmul.f32 %v1561, %v1749
      %v1752 = vmul.f32 %v1563, %v1749
      %v1753 = vmul.f32 %v1741, %v1744
      %1755 = vset.pattern.permute.xlu0 0
      %1756 = vperm.xlu0 %1755, %v1753
      %v1757 = vpop.permute.xlu0 %1756
      %v1759 = vmul.f32 %v592, %v1757
      %v1760 = vmul.f32 %v593, %v1757
      %v1761 = vadd.f32 %v1751, %v1759
      %v1762 = vadd.f32 %v1752, %v1760
      %1763 = vst [vmem:[%s494] sm:$0xff] %v1761
      %1764 = vst [vmem:[%s494 + $0x8] sm:$0xff] %v1762
      %p1765 = scmp.lt.s32.totalorder %s26, 1
      %s1766 = scalar_select %p1765, %s26, 1
      %s1767 = smul.addr %s1766, 2
      %s1768 = smul.addr %s1767, 8
      %s1769 = scalar_lea.vmem %s15, %s1768
      // Predicated region
      $region81: #{hr_branch_forward.2} parent=79 // pred_check
        %p1770 = pneg %p364
      $region82: #{hr_branch_forward.2} parent=79 // pred_check_branch
        %1772 = sbr.rel (%p1770) target = $region84
      $region83: #{hr_branch_forward.2} parent=79 // pred_region
        _
      $region84: #{hr_branch_forward.2} parent=79 // pred_fallthru
        _
    $region80: #{hr_branch_forward.2} parent=5 // pred_fallthru
      _
    %p1773 = scmp.le.s32.totalorder 2, %s21
    // Predicated region
    $region85: #{hr_branch_forward.2} parent=5 // pred_check
      %p1774 = pneg %p1773
    $region86: #{hr_branch_forward.2} parent=5 // pred_check_branch
      %1776 = sbr.rel (%p1774) target = $region88
    $region87: #{hr_branch_forward.2} parent=5 // pred_region
      %s1777 = ssub.s32 %s21, 2
      // Predicated region
      $region89: #{hr_branch_forward.2} parent=87 // pred_check
        %p1778 = pneg %p370
      $region90: #{hr_branch_forward.2} parent=87 // pred_check_branch
        %1780 = sbr.rel (%p1778) target = $region92
      $region91: #{hr_branch_forward.2} parent=87 // pred_region
        %p1781 = scmp.lt.s32.totalorder %s27, 1
        %s1782 = scalar_select %p1781, %s27, 1
        %s1783 = smul.addr %s1782, 2
        %s1784 = smul.addr %s1783, 8
        %s1785 = scalar_lea.vmem %s15, %s1784
      $region92: #{hr_branch_forward.2} parent=87 // pred_fallthru
        _
    $region88: #{hr_branch_forward.2} parent=5 // pred_fallthru
      _
  $region6: #{hr_branch_forward.2} parent=0 // loop_footer
    %s25 = sadd.s32 1, %s21
  $region7: #{hr_branch_forward.2} parent=0 // loop_footer_branch
    %20 = sbr.rel target = $region3
  $region8: #{hr_branch_forward.2} parent=0 // loop_exit
    _

// kernel: hr_branch_forward.3
$region0: #{hr_branch_forward.3}
  #allocation0 [shape = 'u32[]', space=smem, size = 0x4, offset = 0x4, fixed_abs, tag = 'smem constant byte address 0x4 - core index']
  #allocation1 [shape = 'u32[144,128]{1,0:T(1,128)}', space=vmem, size = 0x12000, scoped, tag = 'internal scratch']
  %s0 = inlined_call_operand.vmem [shape: f32[2,72,256], index: 0, kind: input, shape index: {}]
  %s1 = inlined_call_operand.vmem [shape: f32[3,72], index: 1, kind: input, shape index: {}]
  %s2 = inlined_call_operand.vmem [shape: f32[3,1], index: 2, kind: input, shape index: {}]
  %s3 = inlined_call_operand.vmem [shape: f32[2,3,256], index: 3, kind: output, shape index: {}]
  %s4 = sld [smem:[#allocation0]]
  $region45: #{hr_branch_forward.3} parent=0
    _
  %s6 = ssub.s32 1, %s4
  %s7 = scalar_select 0, %s6, %s4
  loop: start=0, step=1, limit=4
  $region2: #{hr_branch_forward.3} parent=0 // loop_pre_header
    _
  $region3: #{hr_branch_forward.3} parent=0 // loop_header
    %s9 = sphi 0, %s13
    %p10 = scmp.ge.s32.totalorder %s9, 4
    %s19 = sphi 0, %s21
    %s22 = sphi 0, %s19
    %s23 = sphi 0, %s22
    %s39 = sphi 0, %s23
    %s43 = sphi 0, %s43
    %s45 = sphi 0, %s43
    %s46 = sphi 0, %s45
    %s60 = sphi 0, %s46
    %s64 = sphi 0, %s64
    %s66 = sphi 0, %s64
    %s67 = sphi 0, %s66
    %s81 = sphi 0, %s67
    %s87 = sphi 0, %s89
    %s90 = sphi 0, %s87
    %s91 = sphi 0, %s90
    %s107 = sphi 0, %s91
  $region4: #{hr_branch_forward.3} parent=0 // loop_header_branch
    %12 = sbr.rel (%p10) target = $region8
  $region5: #{hr_branch_forward.3} parent=0 // loop_body
    %s14 = ssub.s32 %s9, 1
    %s15 = ssub.s32 %s9, 2
    %s16 = sadd.s32 %s9, 1
    %s17 = ssub.s32 %s9, %s16
    %p18 = scmp.eq.s32.totalorder %s17, 0
    %s20 = sadd.s32 %s19, 1
    %s21 = scalar_select %p18, %s19, %s20
    %p24 = pneg %p18
    %p25 = scmp.eq.s32.totalorder %s9, 1
    %p26 = por %p24, %p25
    %p27 = scmp.ne.s32.totalorder %s19, %s22
    %p28 = scmp.eq.s32.totalorder %s9, 0
    %p29 = por %p27, %p28
    %p30 = scmp.ne.s32.totalorder %s19, %s22
    %p31 = scmp.eq.s32.totalorder %s14, 1
    %p32 = por %p30, %p31
    %p33 = scmp.ne.s32.totalorder %s22, %s23
    %p34 = scmp.eq.s32.totalorder %s14, 0
    %p35 = por %p33, %p34
    %p36 = scmp.ne.s32.totalorder %s22, %s23
    %p37 = scmp.eq.s32.totalorder %s15, 1
    %p38 = por %p36, %p37
    %p40 = scmp.ne.s32.totalorder %s23, %s39
    %p41 = scmp.eq.s32.totalorder %s15, 0
    %p42 = por %p40, %p41
    %s44 = sadd.s32 %s43, 1
    %p47 = scmp.eq.s32.totalorder %s9, 1
    %p48 = scmp.ne.s32.totalorder %s43, %s45
    %p49 = scmp.eq.s32.totalorder %s9, 0
    %p50 = por %p48, %p49
    %p51 = scmp.ne.s32.totalorder %s43, %s45
    %p52 = scmp.eq.s32.totalorder %s14, 1
    %p53 = por %p51, %p52
    %p54 = scmp.ne.s32.totalorder %s45, %s46
    %p55 = scmp.eq.s32.totalorder %s14, 0
    %p56 = por %p54, %p55
    %p57 = scmp.ne.s32.totalorder %s45, %s46
    %p58 = scmp.eq.s32.totalorder %s15, 1
    %p59 = por %p57, %p58
    %p61 = scmp.ne.s32.totalorder %s46, %s60
    %p62 = scmp.eq.s32.totalorder %s15, 0
    %p63 = por %p61, %p62
    %s65 = sadd.s32 %s64, 1
    %p68 = scmp.eq.s32.totalorder %s9, 1
    %p69 = scmp.ne.s32.totalorder %s64, %s66
    %p70 = scmp.eq.s32.totalorder %s9, 0
    %p71 = por %p69, %p70
    %p72 = scmp.ne.s32.totalorder %s64, %s66
    %p73 = scmp.eq.s32.totalorder %s14, 1
    %p74 = por %p72, %p73
    %p75 = scmp.ne.s32.totalorder %s66, %s67
    %p76 = scmp.eq.s32.totalorder %s14, 0
    %p77 = por %p75, %p76
    %p78 = scmp.ne.s32.totalorder %s66, %s67
    %p79 = scmp.eq.s32.totalorder %s15, 1
    %p80 = por %p78, %p79
    %p82 = scmp.ne.s32.totalorder %s67, %s81
    %p83 = scmp.eq.s32.totalorder %s15, 0
    %p84 = por %p82, %p83
    %s85 = ssub.s32 %s9, %s16
    %p86 = scmp.eq.s32.totalorder %s85, 0
    %s88 = sadd.s32 %s87, 1
    %s89 = scalar_select %p86, %s87, %s88
    %p92 = pneg %p86
    %p93 = scmp.eq.s32.totalorder %s9, 1
    %p94 = por %p92, %p93
    %p95 = scmp.ne.s32.totalorder %s87, %s90
    %p96 = scmp.eq.s32.totalorder %s9, 0
    %p97 = por %p95, %p96
    %p98 = scmp.ne.s32.totalorder %s87, %s90
    %p99 = scmp.eq.s32.totalorder %s14, 1
    %p100 = por %p98, %p99
    %p101 = scmp.ne.s32.totalorder %s90, %s91
    %p102 = scmp.eq.s32.totalorder %s14, 0
    %p103 = por %p101, %p102
    %p104 = scmp.ne.s32.totalorder %s90, %s91
    %p105 = scmp.eq.s32.totalorder %s15, 1
    %p106 = por %p104, %p105
    %p108 = scmp.ne.s32.totalorder %s91, %s107
    %p109 = scmp.eq.s32.totalorder %s15, 0
    %p110 = por %p108, %p109
    %p111 = scmp.le.s32.totalorder 1, %s9
    %p112 = scmp.lt.s32.totalorder %s9, 3
    %p113 = pnand %p111, %p112
    %p114 = pneg %p113
    // Predicated region
    $region9: #{hr_branch_forward.3} parent=5 // pred_check
      _
    $region10: #{hr_branch_forward.3} parent=5 // pred_check_branch
      %116 = sbr.rel (%p113) target = $region12
    $region11: #{hr_branch_forward.3} parent=5 // pred_region
      %s117 = ssub.s32 %s9, 1
      // Predicated region
      $region13: #{hr_branch_forward.3} parent=11 // pred_check
        %p118 = pneg %p56
      $region14: #{hr_branch_forward.3} parent=11 // pred_check_branch
        %120 = sbr.rel (%p118) target = $region16
      $region15: #{hr_branch_forward.3} parent=11 // pred_region
        _
      $region16: #{hr_branch_forward.3} parent=11 // pred_fallthru
        _
      // Predicated region
      $region17: #{hr_branch_forward.3} parent=11 // pred_check
        %p121 = pneg %p77
      $region18: #{hr_branch_forward.3} parent=11 // pred_check_branch
        %123 = sbr.rel (%p121) target = $region20
      $region19: #{hr_branch_forward.3} parent=11 // pred_region
        _
      $region20: #{hr_branch_forward.3} parent=11 // pred_fallthru
        _
    $region12: #{hr_branch_forward.3} parent=5 // pred_fallthru
      _
    %p124 = scmp.lt.s32.totalorder %s9, 2
    // Predicated region
    $region21: #{hr_branch_forward.3} parent=5 // pred_check
      %p125 = pneg %p124
    $region22: #{hr_branch_forward.3} parent=5 // pred_check_branch
      %127 = sbr.rel (%p125) target = $region24
    $region23: #{hr_branch_forward.3} parent=5 // pred_region
      // Predicated region
      $region25: #{hr_branch_forward.3} parent=23 // pred_check
        %p128 = pneg %p29
      $region26: #{hr_branch_forward.3} parent=23 // pred_check_branch
        %130 = sbr.rel (%p128) target = $region28
      $region27: #{hr_branch_forward.3} parent=23 // pred_region
        %p131 = scmp.lt.s32.totalorder %s9, 1
        %s132 = scalar_select %p131, %s9, 1
        %s133 = smul.addr %s132, 18
        %s134 = smul.addr %s133, 8
        %s135 = scalar_lea.vmem %s0, %s134
      $region28: #{hr_branch_forward.3} parent=23 // pred_fallthru
        _
    $region24: #{hr_branch_forward.3} parent=5 // pred_fallthru
      _
    %p136 = scmp.le.s32.totalorder 1, %s9
    %p137 = scmp.lt.s32.totalorder %s9, 3
    %p138 = pnand %p136, %p137
    %p139 = pneg %p138
    // Predicated region
    $region29: #{hr_branch_forward.3} parent=5 // pred_check
      _
    $region30: #{hr_branch_forward.3} parent=5 // pred_check_branch
      %141 = sbr.rel (%p138) target = $region32
    $region31: #{hr_branch_forward.3} parent=5 // pred_region
      %s142 = ssub.s32 %s9, 1
      %p143 = scmp.lt.s32.totalorder %s14, 1
      %s144 = scalar_select %p143, %s14, 1
      %s145 = smul.addr %s144, 18
      %s146 = smul.addr %s145, 8
      %s147 = scalar_lea.vmem %s0, %s146
      %p148 = pneg %p35
      %p149 = pneg %p32
      %p150 = pneg %p56
      %p151 = pneg %p53
      %p152 = pneg %p77
      %p153 = pneg %p74
      %p154 = pneg %p103
      %p155 = pneg %p100
      %p156 = scmp.lt.s32.totalorder %s14, 1
      %s157 = scalar_select %p156, %s14, 1
      %s158 = smul.addr %s157, 2
      %s159 = smul.addr %s158, 4
      %s160 = scalar_lea.vmem %s3, %s159
      %p161 = scmp.lt.s32.totalorder %s14, 1
      %s162 = scalar_select %p161, %s14, 1
      %s163 = smul.addr %s162, 18
      %s164 = smul.addr %s163, 8
      %s165 = scalar_lea.vmem %s0, %s164
      %p166 = scmp.lt.s32.totalorder %s14, 1
      %s167 = scalar_select %p166, %s14, 1
      %s168 = smul.addr %s167, 2
      %s169 = smul.addr %s168, 4
      %s170 = scalar_lea.vmem %s3, %s169
      %v171 = vld [vmem:[%s1] sm:$0x7]
      %v172 = vld [vmem:[%s165] sm:$0xff]
      %v173 = vld [vmem:[%s165 + $0x8] sm:$0xff]
      %v174 = vld [vmem:[%s165 + $0x10] sm:$0xff]
      %v175 = vld [vmem:[%s165 + $0x18] sm:$0xff]
      %v176 = vld [vmem:[%s165 + $0x20] sm:$0xff]
      %v177 = vld [vmem:[%s165 + $0x28] sm:$0xff]
      %v178 = vld [vmem:[%s165 + $0x30] sm:$0xff]
      %v179 = vld [vmem:[%s165 + $0x38] sm:$0xff]
      %v180 = vld [vmem:[%s165 + $0x40] sm:$0xff]
      %v181 = vld [vmem:[%s165 + $0x48] sm:$0xff]
      %v182 = vld [vmem:[%s165 + $0x50] sm:$0xff]
      %v183 = vld [vmem:[%s165 + $0x58] sm:$0xff]
      %v184 = vld [vmem:[%s165 + $0x60] sm:$0xff]
      %v185 = vld [vmem:[%s165 + $0x68] sm:$0xff]
      %v186 = vld [vmem:[%s165 + $0x70] sm:$0xff]
      %v187 = vld [vmem:[%s165 + $0x78] sm:$0xff]
      %v188 = vld [vmem:[%s165 + $0x80] sm:$0xff]
      %v189 = vld [vmem:[%s165 + $0x88] sm:$0xff]
      %v190 = vld [vmem:[%s2] sm:$0x7]
      %192 = vset.pattern.permute.xlu0 0
      %193 = vperm.xlu0 %192, %v190
      %v194 = vpop.permute.xlu0 %193
      %vm196 = vcmask 588800
      %v198 = vsel %vm196, %v171, 0
      %200 = vmatprep.subr.mxu0 %v173
      %201 = vmatpush1.msra.mxu0 %v172
      %202 = vmatprep.subr.mxu0 %v175
      %203 = vmatpush1.msra.mxu0 %v174
      %204 = vmatprep.subr.mxu0 %v177
      %205 = vmatpush1.msra.mxu0 %v176
      %206 = vmatprep.subr.mxu0 %v179
      %207 = vmatpush1.msra.mxu0 %v178
      %208 = vmatprep.subr.mxu0 %v181
      %209 = vmatpush1.msra.mxu0 %v180
      %210 = vmatprep.subr.mxu0 %v183
      %211 = vmatpush1.msra.mxu0 %v182
      %212 = vmatprep.subr.mxu0 %v185
      %213 = vmatpush1.msra.mxu0 %v184
      %214 = vmatprep.subr.mxu0 %v187
      %215 = vmatpush1.msra.mxu0 %v186
      %216 = vmatprep.subr.mxu0 %v189
      %217 = vmatpush1.msra.mxu0 %v188
      %218 = vmatprep.subr.mxu0 0.0
      %219 = vmatpush1.msra.mxu0 0.0
      %220 = vmatprep.subr.mxu0 0.0
      %221 = vmatpush1.msra.mxu0 0.0
      %222 = vmatprep.subr.mxu0 0.0
      %223 = vmatpush1.msra.mxu0 0.0
      %224 = vmatprep.subr.mxu0 0.0
      %225 = vmatpush1.msra.mxu0 0.0
      %226 = vmatprep.subr.mxu0 0.0
      %227 = vmatpush1.msra.mxu0 0.0
      %228 = vmatprep.subr.mxu0 0.0
      %229 = vmatpush1.msra.mxu0 0.0
      %230 = vmatprep.subr.mxu0 0.0
      %231 = vmatpush1.msra.mxu0 0.0
      %232 = vmatprep.subr.mxu0 0.0
      %233 = vmatpush1.msra.mxu0 0.0
      %234 = vmatprep.subr.mxu0 0.0
      %235 = vmatpush1.msra.mxu0 0.0
      %236 = vmatprep.subr.mxu0 0.0
      %237 = vmatpush1.msra.mxu0 0.0
      %238 = vmatprep.subr.mxu0 0.0
      %239 = vmatpush1.msra.mxu0 0.0
      %240 = vmatprep.subr.mxu0 0.0
      %241 = vmatpush1.msra.mxu0 0.0
      %242 = vmatprep.subr.mxu0 0.0
      %243 = vmatpush1.msra.mxu0 0.0
      %244 = vmatprep.subr.mxu0 0.0
      %245 = vmatpush1.msra.mxu0 0.0
      %246 = vmatprep.subr.mxu0 0.0
      %247 = vmatpush1.msra.mxu0 0.0
      %248 = vmatprep.subr.mxu0 0.0
      %249 = vmatpush1.msra.mxu0 0.0
      %250 = vmatprep.subr.mxu0 0.0
      %251 = vmatpush1.msra.mxu0 0.0
      %252 = vmatprep.subr.mxu0 0.0
      %253 = vmatpush1.msra.mxu0 0.0
      %254 = vmatprep.subr.mxu0 0.0
      %255 = vmatpush1.msra.mxu0 0.0
      %256 = vmatprep.subr.mxu0 0.0
      %257 = vmatpush1.msra.mxu0 0.0
      %258 = vmatprep.subr.mxu0 0.0
      %259 = vmatpush1.msra.mxu0 0.0
      %260 = vmatprep.subr.mxu0 0.0
      %261 = vmatpush1.msra.mxu0 0.0
      %262 = vmatprep.subr.mxu0 0.0
      %263 = vmatpush1.msra.mxu0 0.0
      %264 = vmatprep.mubr.f32.mxu0 0.0
      %265 = vmatmul.mubr.f32.gmra.mrb[0].mxu0 %v198
      %v266 = vpop.f32.mrb[0].mxu0
      %v267 = vadd.f32 %v194, %v266
      %v268 = vpop.f32.mrb[0].mxu0
      %v269 = vadd.f32 %v194, %v268
      %270 = vdwg.mxu0
      %v271 = vtanh.pop %v267
      %v272 = vtanh.pop %v269
      %v275 = vcombine.low %v271, %v272
      %277 = vst [vmem:[%s170] sm:$0x77] %v275
      %p278 = scmp.lt.s32.totalorder %s14, 1
      %s279 = scalar_select %p278, %s14, 1
      %s280 = smul.addr %s279, 2
      %s281 = smul.addr %s280, 4
      %s282 = scalar_lea.vmem %s3, %s281
      // Predicated region
      $region33: #{hr_branch_forward.3} parent=31 // pred_check
        %p283 = pneg %p100
      $region34: #{hr_branch_forward.3} parent=31 // pred_check_branch
        %285 = sbr.rel (%p283) target = $region36
      $region35: #{hr_branch_forward.3} parent=31 // pred_region
        _
      $region36: #{hr_branch_forward.3} parent=31 // pred_fallthru
        _
    $region32: #{hr_branch_forward.3} parent=5 // pred_fallthru
      _
    %p286 = scmp.le.s32.totalorder 2, %s9
    // Predicated region
    $region37: #{hr_branch_forward.3} parent=5 // pred_check
      %p287 = pneg %p286
    $region38: #{hr_branch_forward.3} parent=5 // pred_check_branch
      %289 = sbr.rel (%p287) target = $region40
    $region39: #{hr_branch_forward.3} parent=5 // pred_region
      %s290 = ssub.s32 %s9, 2
      // Predicated region
      $region41: #{hr_branch_forward.3} parent=39 // pred_check
        %p291 = pneg %p106
      $region42: #{hr_branch_forward.3} parent=39 // pred_check_branch
        %293 = sbr.rel (%p291) target = $region44
      $region43: #{hr_branch_forward.3} parent=39 // pred_region
        %p294 = scmp.lt.s32.totalorder %s15, 1
        %s295 = scalar_select %p294, %s15, 1
        %s296 = smul.addr %s295, 2
        %s297 = smul.addr %s296, 4
        %s298 = scalar_lea.vmem %s3, %s297
      $region44: #{hr_branch_forward.3} parent=39 // pred_fallthru
        _
    $region40: #{hr_branch_forward.3} parent=5 // pred_fallthru
      _
  $region6: #{hr_branch_forward.3} parent=0 // loop_footer
    %s13 = sadd.s32 1, %s9
  $region7: #{hr_branch_forward.3} parent=0 // loop_footer_branch
    %8 = sbr.rel target = $region3
  $region8: #{hr_branch_forward.3} parent=0 // loop_exit
    _

</llo_original>
